<compile_context>
chip_gen: v6e
topology: v6e:2x2x1
jax: 0.10.0
libtpu: 0.0.40
codegen_flags: <defaults>
</compile_context>

<pallas_src>
import functools
import math

import jax
import jax.numpy as jnp
from jax.experimental import pallas as pl
from jax.experimental.pallas import tpu as pltpu

LANE = 128  # TPU lane width; hidden widths are padded to this (lane-dense).


def _round_up(x, m):
    return ((x + m - 1) // m) * m


def dqn_mlp_kernel(x_ref,
                   w0_ref, b0_ref,
                   w1_ref, b1_ref,
                   w2_ref, b2_ref,
                   wo_ref, bo_ref,
                   o_ref):
    """One (TM, *) batch tile of the DQN forward pass.

    x and all weights are bf16 (MXU-native), every dot accumulates in f32,
    bias-add / ReLU run in f32 (v5e-safe) with one bf16 cast per layer to
    feed the next matmul.  The final layer is narrow (out_features columns)
    so the store writes only the needed bytes.
    """
    h = x_ref[...]  # (TM, in_features) bf16

    def dense_relu(h, w_ref, b_ref):
        acc = jnp.dot(h, w_ref[...], preferred_element_type=jnp.float32)
        return jnp.maximum(acc + b_ref[...], 0.0).astype(jnp.bfloat16)

    h = dense_relu(h, w0_ref, b0_ref)
    h = dense_relu(h, w1_ref, b1_ref)
    h = dense_relu(h, w2_ref, b2_ref)

    acc = jnp.dot(h, wo_ref[...], preferred_element_type=jnp.float32)
    o_ref[...] = acc + bo_ref[...]   # (TM, out_features) f32


def dqn_forward_pallas(x, padded_params, out_features, *,
                       tm_max=1024, min_steps=2):
    """x: (batch, in_features) f32 (cast to bf16 internally).

    padded_params: list of (W, b); hidden W bf16 (in_pad, 128) with exactly-
    zero padding, last W bf16 (in_pad, out_features); b f32 (1, width).
    Returns (batch, out_features) f32.
    """
    batch, in_features = x.shape

    # --- tiling policy -----------------------------------------------------
    # Pad the batch only to a multiple of 8*n_steps (minimal waste), keep at
    # least `min_steps` grid steps so the parallel axis can shard across both
    # TensorCores on v7x, and cap the per-step tile at tm_max rows.
    batch8 = _round_up(max(batch, 8), 8)
    n_steps = max(min_steps, pl.cdiv(batch8, tm_max))
    batch_pad = _round_up(batch, 8 * n_steps)
    tm = batch_pad // n_steps          # multiple of 8 by construction

    x = x.astype(jnp.bfloat16)          # cast once in the wrapper, not per tile
    if batch_pad != batch:
        x = jnp.pad(x, ((0, batch_pad - batch), (0, 0)))

    grid = (n_steps,)

    x_spec = pl.BlockSpec((tm, in_features), lambda i: (i, 0))
    out_spec = pl.BlockSpec((tm, out_features), lambda i: (i, 0))

    in_specs = [x_spec]
    operands = [x]
    for w, b in padded_params:
        # Constant index_map -> weights/biases DMA'd once, resident in VMEM.
        in_specs.append(pl.BlockSpec(w.shape, lambda i: (0, 0)))
        in_specs.append(pl.BlockSpec(b.shape, lambda i: (0, 0)))
        operands.extend([w, b])

    out = pl.pallas_call(
        dqn_mlp_kernel,
        out_shape=jax.ShapeDtypeStruct((batch_pad, out_features), jnp.float32),
        grid=grid,
        in_specs=in_specs,
        out_specs=out_spec,
        compiler_params=pltpu.CompilerParams(
            dimension_semantics=("parallel",)),   # megacore-shardable on v7x
    )(*operands)

    if batch_pad != batch:
        out = out[:batch]
    return out


def init_linear_params(key, in_features, out_features):
    """Deterministic init mimicking torch.nn.Linear default (uniform +-1/sqrt(fan_in))."""
    kw, kb = jax.random.split(key)
    bound = 1.0 / math.sqrt(in_features)
    w = jax.random.uniform(kw, (in_features, out_features), jnp.float32,
                           minval=-bound, maxval=bound)
    b = jax.random.uniform(kb, (1, out_features), jnp.float32,
                           minval=-bound, maxval=bound)
    return w, b


def build_dqn_params(key, input_size, output_size, hidden_layers_num=3):
    """Unpadded f32 params, (in, out) weight layout — matches the PyTorch init sizes."""
    size_divided = (output_size - input_size) // (hidden_layers_num + 1)
    params = []
    for i in range(hidden_layers_num):
        in_size = i * size_divided + input_size
        out_size = (i + 1) * size_divided + input_size
        key, sub = jax.random.split(key)
        params.append(init_linear_params(sub, in_size, out_size))
    key, sub = jax.random.split(key)
    params.append(init_linear_params(
        sub, hidden_layers_num * size_divided + input_size, output_size))
    return params


def pad_params_for_kernel(params, input_size, weight_dtype=jnp.bfloat16):
    """Zero-pad every *hidden* layer's output width to a LANE multiple (and the
    following layer's input rows to match).  The final layer's output width is
    left at its natural size so the kernel can store the narrow result
    directly.  Padded weight rows/cols and padded bias columns are exactly
    zero, so padded lanes stay zero through matmul + bias + ReLU and do not
    perturb the valid columns."""
    padded = []
    prev_out_pad = input_size  # first layer keeps the natural input width
    n = len(params)
    for li, (w, b) in enumerate(params):
        in_size, out_size = w.shape
        is_last = (li == n - 1)
        out_pad = out_size if is_last else _round_up(out_size, LANE)
        w_p = jnp.zeros((prev_out_pad, out_pad), jnp.float32)
        w_p = w_p.at[:in_size, :out_size].set(w)
        b_p = jnp.zeros((1, out_pad), jnp.float32)
        b_p = b_p.at[:, :out_size].set(b)
        padded.append((w_p.astype(weight_dtype), b_p))
        prev_out_pad = out_pad
    return padded


def dqn_forward_reference(x, params):
    """Pure-f32 reference matching the PyTorch forward."""
    h = x
    for (w, b) in params[:-1]:
        h = jnp.maximum(h @ w + b, 0.0)
    wo, bo = params[-1]
    return h @ wo + bo


# TODO(synk): optimize()/pick_sample()/evaluate() (Adam training step, argmax
# action selection, env rollout) are host/training logic, not part of the
# forward pass, and are not implemented as Pallas kernels.

if __name__ == "__main__":
    input_size = 8
    output_size = 32
    hidden_layers_num = 3
    batch = 512   # exercises the 2-step parallel grid (tm=256 per step)

    root = jax.random.PRNGKey(0)
    key_params, key_x = jax.random.split(root)

    params = build_dqn_params(key_params, input_size, output_size,
                              hidden_layers_num)
    padded_params = pad_params_for_kernel(params, input_size)
    x = jax.random.normal(key_x, (batch, input_size), jnp.float32)

    fwd = jax.jit(functools.partial(dqn_forward_pallas,
                                    out_features=output_size))
    out = fwd(x, padded_params)
    out = jax.block_until_ready(out)

    ref = dqn_forward_reference(x, params)
    assert out.shape == (batch, output_size)
    max_err = float(jnp.max(jnp.abs(out - ref)))
    # bf16 matmul inputs (f32 accumulate) => small, bounded deviation vs pure f32.
    assert jnp.allclose(out, ref, atol=3e-2, rtol=3e-2), (
        f"mismatch vs reference, max abs err {max_err}")

    print("KERNEL_OK")
</pallas_src>

<mosaic_0001>
module attributes {stable_mosaic.version = 11 : i64} {
  func.func @dqn_mlp_kernel(%arg0: i32, %arg1: memref<256x8xbf16, #tpu.memory_space<vmem>>, %arg2: memref<8x128xbf16, #tpu.memory_space<vmem>>, %arg3: memref<1x128xf32, #tpu.memory_space<vmem>>, %arg4: memref<128x128xbf16, #tpu.memory_space<vmem>>, %arg5: memref<1x128xf32, #tpu.memory_space<vmem>>, %arg6: memref<128x128xbf16, #tpu.memory_space<vmem>>, %arg7: memref<1x128xf32, #tpu.memory_space<vmem>>, %arg8: memref<128x32xbf16, #tpu.memory_space<vmem>>, %arg9: memref<1x32xf32, #tpu.memory_space<vmem>>, %arg10: memref<256x32xf32, #tpu.memory_space<vmem>>) attributes {dimension_semantics = [#tpu.dimension_semantics<parallel>], iteration_bounds = array<i64: 2>, scalar_prefetch = 0 : i64, scratch_operands = 0 : i64, tpu.core_type = #tpu.core_type<tc>, window_params = [{transform_indices = @transform_0, window_bounds = array<i64: 256, 8>}, {pipeline_mode = #tpu.pipeline_mode<synchronous>, transform_indices = @transform_1, window_bounds = array<i64: 8, 128>}, {pipeline_mode = #tpu.pipeline_mode<synchronous>, transform_indices = @transform_2, window_bounds = array<i64: 1, 128>}, {pipeline_mode = #tpu.pipeline_mode<synchronous>, transform_indices = @transform_3, window_bounds = array<i64: 128, 128>}, {pipeline_mode = #tpu.pipeline_mode<synchronous>, transform_indices = @transform_4, window_bounds = array<i64: 1, 128>}, {pipeline_mode = #tpu.pipeline_mode<synchronous>, transform_indices = @transform_5, window_bounds = array<i64: 128, 128>}, {pipeline_mode = #tpu.pipeline_mode<synchronous>, transform_indices = @transform_6, window_bounds = array<i64: 1, 128>}, {pipeline_mode = #tpu.pipeline_mode<synchronous>, transform_indices = @transform_7, window_bounds = array<i64: 128, 32>}, {pipeline_mode = #tpu.pipeline_mode<synchronous>, transform_indices = @transform_8, window_bounds = array<i64: 1, 32>}, {transform_indices = @transform_9, window_bounds = array<i64: 256, 32>}]} {
    %c0 = arith.constant 0 : index
    %c0_0 = arith.constant 0 : index
    %0 = vector.load %arg1[%c0, %c0_0] : memref<256x8xbf16, #tpu.memory_space<vmem>>, vector<256x8xbf16>
    %c0_1 = arith.constant 0 : index
    %c0_2 = arith.constant 0 : index
    %1 = vector.load %arg2[%c0_1, %c0_2] : memref<8x128xbf16, #tpu.memory_space<vmem>>, vector<8x128xbf16>
    %cst = arith.constant dense<0.000000e+00> : vector<256x128xf32>
    %2 = tpu.matmul %0, %1, %cst {dimension_numbers = #tpu.dot_dimension_numbers<[1], [0], [0], [1], [0, 0, 1, 1], [], []>} : vector<256x8xbf16>, vector<8x128xbf16>, vector<256x128xf32> -> vector<256x128xf32>
    %c0_3 = arith.constant 0 : index
    %c0_4 = arith.constant 0 : index
    %3 = vector.load %arg3[%c0_3, %c0_4] : memref<1x128xf32, #tpu.memory_space<vmem>>, vector<1x128xf32>
    %4 = vector.broadcast %3 : vector<1x128xf32> to vector<256x128xf32>
    %5 = arith.addf %2, %4 : vector<256x128xf32>
    %cst_5 = arith.constant 0.000000e+00 : f32
    %6 = vector.broadcast %cst_5 : f32 to vector<256x128xf32>
    %7 = arith.maximumf %5, %6 : vector<256x128xf32>
    %8 = arith.truncf %7 : vector<256x128xf32> to vector<256x128xbf16>
    %c0_6 = arith.constant 0 : index
    %c0_7 = arith.constant 0 : index
    %9 = vector.load %arg4[%c0_6, %c0_7] : memref<128x128xbf16, #tpu.memory_space<vmem>>, vector<128x128xbf16>
    %cst_8 = arith.constant dense<0.000000e+00> : vector<256x128xf32>
    %10 = tpu.matmul %8, %9, %cst_8 {dimension_numbers = #tpu.dot_dimension_numbers<[1], [0], [0], [1], [0, 0, 1, 1], [], []>} : vector<256x128xbf16>, vector<128x128xbf16>, vector<256x128xf32> -> vector<256x128xf32>
    %c0_9 = arith.constant 0 : index
    %c0_10 = arith.constant 0 : index
    %11 = vector.load %arg5[%c0_9, %c0_10] : memref<1x128xf32, #tpu.memory_space<vmem>>, vector<1x128xf32>
    %12 = vector.broadcast %11 : vector<1x128xf32> to vector<256x128xf32>
    %13 = arith.addf %10, %12 : vector<256x128xf32>
    %cst_11 = arith.constant 0.000000e+00 : f32
    %14 = vector.broadcast %cst_11 : f32 to vector<256x128xf32>
    %15 = arith.maximumf %13, %14 : vector<256x128xf32>
    %16 = arith.truncf %15 : vector<256x128xf32> to vector<256x128xbf16>
    %c0_12 = arith.constant 0 : index
    %c0_13 = arith.constant 0 : index
    %17 = vector.load %arg6[%c0_12, %c0_13] : memref<128x128xbf16, #tpu.memory_space<vmem>>, vector<128x128xbf16>
    %cst_14 = arith.constant dense<0.000000e+00> : vector<256x128xf32>
    %18 = tpu.matmul %16, %17, %cst_14 {dimension_numbers = #tpu.dot_dimension_numbers<[1], [0], [0], [1], [0, 0, 1, 1], [], []>} : vector<256x128xbf16>, vector<128x128xbf16>, vector<256x128xf32> -> vector<256x128xf32>
    %c0_15 = arith.constant 0 : index
    %c0_16 = arith.constant 0 : index
    %19 = vector.load %arg7[%c0_15, %c0_16] : memref<1x128xf32, #tpu.memory_space<vmem>>, vector<1x128xf32>
    %20 = vector.broadcast %19 : vector<1x128xf32> to vector<256x128xf32>
    %21 = arith.addf %18, %20 : vector<256x128xf32>
    %cst_17 = arith.constant 0.000000e+00 : f32
    %22 = vector.broadcast %cst_17 : f32 to vector<256x128xf32>
    %23 = arith.maximumf %21, %22 : vector<256x128xf32>
    %24 = arith.truncf %23 : vector<256x128xf32> to vector<256x128xbf16>
    %c0_18 = arith.constant 0 : index
    %c0_19 = arith.constant 0 : index
    %25 = vector.load %arg8[%c0_18, %c0_19] : memref<128x32xbf16, #tpu.memory_space<vmem>>, vector<128x32xbf16>
    %cst_20 = arith.constant dense<0.000000e+00> : vector<256x32xf32>
    %26 = tpu.matmul %24, %25, %cst_20 {dimension_numbers = #tpu.dot_dimension_numbers<[1], [0], [0], [1], [0, 0, 1, 1], [], []>} : vector<256x128xbf16>, vector<128x32xbf16>, vector<256x32xf32> -> vector<256x32xf32>
    %c0_21 = arith.constant 0 : index
    %c0_22 = arith.constant 0 : index
    %27 = vector.load %arg9[%c0_21, %c0_22] : memref<1x32xf32, #tpu.memory_space<vmem>>, vector<1x32xf32>
    %28 = vector.broadcast %27 : vector<1x32xf32> to vector<256x32xf32>
    %29 = arith.addf %26, %28 : vector<256x32xf32>
    %c0_23 = arith.constant 0 : index
    %c0_24 = arith.constant 0 : index
    %30 = vector.load %arg10[%c0_23, %c0_24] : memref<256x32xf32, #tpu.memory_space<vmem>>, vector<256x32xf32>
    tpu.vector_store %arg10[%c0_23, %c0_24], %29 {strides = array<i32>} : memref<256x32xf32, #tpu.memory_space<vmem>>, vector<256x32xf32>,
    return
  }
  func.func @transform_0(%arg0: i32) -> (i32, i32) {
    %c0_i32 = arith.constant 0 : i32
    %c0_i32_0 = arith.constant 0 : i32
    return %arg0, %c0_i32 : i32, i32
  }
  func.func @transform_1(%arg0: i32) -> (i32, i32) {
    %c0_i32 = arith.constant 0 : i32
    %c0_i32_0 = arith.constant 0 : i32
    %c0_i32_1 = arith.constant 0 : i32
    return %c0_i32, %c0_i32_0 : i32, i32
  }
  func.func @transform_2(%arg0: i32) -> (i32, i32) {
    %c0_i32 = arith.constant 0 : i32
    %c0_i32_0 = arith.constant 0 : i32
    %c0_i32_1 = arith.constant 0 : i32
    return %c0_i32, %c0_i32_0 : i32, i32
  }
  func.func @transform_3(%arg0: i32) -> (i32, i32) {
    %c0_i32 = arith.constant 0 : i32
    %c0_i32_0 = arith.constant 0 : i32
    %c0_i32_1 = arith.constant 0 : i32
    return %c0_i32, %c0_i32_0 : i32, i32
  }
  func.func @transform_4(%arg0: i32) -> (i32, i32) {
    %c0_i32 = arith.constant 0 : i32
    %c0_i32_0 = arith.constant 0 : i32
    %c0_i32_1 = arith.constant 0 : i32
    return %c0_i32, %c0_i32_0 : i32, i32
  }
  func.func @transform_5(%arg0: i32) -> (i32, i32) {
    %c0_i32 = arith.constant 0 : i32
    %c0_i32_0 = arith.constant 0 : i32
    %c0_i32_1 = arith.constant 0 : i32
    return %c0_i32, %c0_i32_0 : i32, i32
  }
  func.func @transform_6(%arg0: i32) -> (i32, i32) {
    %c0_i32 = arith.constant 0 : i32
    %c0_i32_0 = arith.constant 0 : i32
    %c0_i32_1 = arith.constant 0 : i32
    return %c0_i32, %c0_i32_0 : i32, i32
  }
  func.func @transform_7(%arg0: i32) -> (i32, i32) {
    %c0_i32 = arith.constant 0 : i32
    %c0_i32_0 = arith.constant 0 : i32
    %c0_i32_1 = arith.constant 0 : i32
    return %c0_i32, %c0_i32_0 : i32, i32
  }
  func.func @transform_8(%arg0: i32) -> (i32, i32) {
    %c0_i32 = arith.constant 0 : i32
    %c0_i32_0 = arith.constant 0 : i32
    %c0_i32_1 = arith.constant 0 : i32
    return %c0_i32, %c0_i32_0 : i32, i32
  }
  func.func @transform_9(%arg0: i32) -> (i32, i32) {
    %c0_i32 = arith.constant 0 : i32
    %c0_i32_0 = arith.constant 0 : i32
    return %arg0, %c0_i32 : i32, i32
  }
}

</mosaic_0001>

<llo_original>
// kernel: dqn_forward_pallas.1
$region0: #{dqn_forward_pallas.1}
  #allocation0 [shape = 'u32[]', space=smem, size = 0x4, offset = 0x4, fixed_abs, tag = 'smem constant byte address 0x4 - core index']
  #allocation1 [shape = 'u32[144,128]{1,0:T(1,128)}', space=vmem, size = 0x12000, scoped, tag = 'internal scratch']
  %s0 = inlined_call_operand.vmem [shape: bf16[512,8], index: 0, kind: input, shape index: {}]
  %s1 = inlined_call_operand.vmem [shape: bf16[8,128], index: 1, kind: input, shape index: {}]
  %s2 = inlined_call_operand.vmem [shape: f32[1,128], index: 2, kind: input, shape index: {}]
  %s3 = inlined_call_operand.vmem [shape: bf16[128,128], index: 3, kind: input, shape index: {}]
  %s4 = inlined_call_operand.vmem [shape: f32[1,128], index: 4, kind: input, shape index: {}]
  %s5 = inlined_call_operand.vmem [shape: bf16[128,128], index: 5, kind: input, shape index: {}]
  %s6 = inlined_call_operand.vmem [shape: f32[1,128], index: 6, kind: input, shape index: {}]
  %s7 = inlined_call_operand.vmem [shape: bf16[128,32], index: 7, kind: input, shape index: {}]
  %s8 = inlined_call_operand.vmem [shape: f32[1,32], index: 8, kind: input, shape index: {}]
  %s9 = inlined_call_operand.vmem [shape: f32[512,32], index: 9, kind: output, shape index: {}]
  %s10 = sld [smem:[#allocation0]]
  $region69: #{dqn_forward_pallas.1} parent=0
    _
  %s12 = ssub.s32 1, %s10
  %s13 = scalar_select 0, %s12, %s10
  loop: start=0, step=1, limit=4
  $region2: #{dqn_forward_pallas.1} parent=0 // loop_pre_header
    _
  $region3: #{dqn_forward_pallas.1} parent=0 // loop_header
    %s15 = sphi 0, %s19
    %p16 = scmp.ge.s32.totalorder %s15, 4
    %s25 = sphi 0, %s27
    %s28 = sphi 0, %s25
    %s29 = sphi 0, %s28
    %s45 = sphi 0, %s29
    %s49 = sphi 0, %s49
    %s51 = sphi 0, %s49
    %s52 = sphi 0, %s51
    %s66 = sphi 0, %s52
    %s70 = sphi 0, %s70
    %s72 = sphi 0, %s70
    %s73 = sphi 0, %s72
    %s87 = sphi 0, %s73
    %s91 = sphi 0, %s91
    %s93 = sphi 0, %s91
    %s94 = sphi 0, %s93
    %s108 = sphi 0, %s94
    %s112 = sphi 0, %s112
    %s114 = sphi 0, %s112
    %s115 = sphi 0, %s114
    %s129 = sphi 0, %s115
    %s133 = sphi 0, %s133
    %s135 = sphi 0, %s133
    %s136 = sphi 0, %s135
    %s150 = sphi 0, %s136
    %s154 = sphi 0, %s154
    %s156 = sphi 0, %s154
    %s157 = sphi 0, %s156
    %s171 = sphi 0, %s157
    %s175 = sphi 0, %s175
    %s177 = sphi 0, %s175
    %s178 = sphi 0, %s177
    %s192 = sphi 0, %s178
    %s196 = sphi 0, %s196
    %s198 = sphi 0, %s196
    %s199 = sphi 0, %s198
    %s213 = sphi 0, %s199
    %s219 = sphi 0, %s221
    %s222 = sphi 0, %s219
    %s223 = sphi 0, %s222
    %s239 = sphi 0, %s223
  $region4: #{dqn_forward_pallas.1} parent=0 // loop_header_branch
    %18 = sbr.rel (%p16) target = $region8
  $region5: #{dqn_forward_pallas.1} parent=0 // loop_body
    %s20 = ssub.s32 %s15, 1
    %s21 = ssub.s32 %s15, 2
    %s22 = sadd.s32 %s15, 1
    %s23 = ssub.s32 %s15, %s22
    %p24 = scmp.eq.s32.totalorder %s23, 0
    %s26 = sadd.s32 %s25, 1
    %s27 = scalar_select %p24, %s25, %s26
    %p30 = pneg %p24
    %p31 = scmp.eq.s32.totalorder %s15, 1
    %p32 = por %p30, %p31
    %p33 = scmp.ne.s32.totalorder %s25, %s28
    %p34 = scmp.eq.s32.totalorder %s15, 0
    %p35 = por %p33, %p34
    %p36 = scmp.ne.s32.totalorder %s25, %s28
    %p37 = scmp.eq.s32.totalorder %s20, 1
    %p38 = por %p36, %p37
    %p39 = scmp.ne.s32.totalorder %s28, %s29
    %p40 = scmp.eq.s32.totalorder %s20, 0
    %p41 = por %p39, %p40
    %p42 = scmp.ne.s32.totalorder %s28, %s29
    %p43 = scmp.eq.s32.totalorder %s21, 1
    %p44 = por %p42, %p43
    %p46 = scmp.ne.s32.totalorder %s29, %s45
    %p47 = scmp.eq.s32.totalorder %s21, 0
    %p48 = por %p46, %p47
    %s50 = sadd.s32 %s49, 1
    %p53 = scmp.eq.s32.totalorder %s15, 1
    %p54 = scmp.ne.s32.totalorder %s49, %s51
    %p55 = scmp.eq.s32.totalorder %s15, 0
    %p56 = por %p54, %p55
    %p57 = scmp.ne.s32.totalorder %s49, %s51
    %p58 = scmp.eq.s32.totalorder %s20, 1
    %p59 = por %p57, %p58
    %p60 = scmp.ne.s32.totalorder %s51, %s52
    %p61 = scmp.eq.s32.totalorder %s20, 0
    %p62 = por %p60, %p61
    %p63 = scmp.ne.s32.totalorder %s51, %s52
    %p64 = scmp.eq.s32.totalorder %s21, 1
    %p65 = por %p63, %p64
    %p67 = scmp.ne.s32.totalorder %s52, %s66
    %p68 = scmp.eq.s32.totalorder %s21, 0
    %p69 = por %p67, %p68
    %s71 = sadd.s32 %s70, 1
    %p74 = scmp.eq.s32.totalorder %s15, 1
    %p75 = scmp.ne.s32.totalorder %s70, %s72
    %p76 = scmp.eq.s32.totalorder %s15, 0
    %p77 = por %p75, %p76
    %p78 = scmp.ne.s32.totalorder %s70, %s72
    %p79 = scmp.eq.s32.totalorder %s20, 1
    %p80 = por %p78, %p79
    %p81 = scmp.ne.s32.totalorder %s72, %s73
    %p82 = scmp.eq.s32.totalorder %s20, 0
    %p83 = por %p81, %p82
    %p84 = scmp.ne.s32.totalorder %s72, %s73
    %p85 = scmp.eq.s32.totalorder %s21, 1
    %p86 = por %p84, %p85
    %p88 = scmp.ne.s32.totalorder %s73, %s87
    %p89 = scmp.eq.s32.totalorder %s21, 0
    %p90 = por %p88, %p89
    %s92 = sadd.s32 %s91, 1
    %p95 = scmp.eq.s32.totalorder %s15, 1
    %p96 = scmp.ne.s32.totalorder %s91, %s93
    %p97 = scmp.eq.s32.totalorder %s15, 0
    %p98 = por %p96, %p97
    %p99 = scmp.ne.s32.totalorder %s91, %s93
    %p100 = scmp.eq.s32.totalorder %s20, 1
    %p101 = por %p99, %p100
    %p102 = scmp.ne.s32.totalorder %s93, %s94
    %p103 = scmp.eq.s32.totalorder %s20, 0
    %p104 = por %p102, %p103
    %p105 = scmp.ne.s32.totalorder %s93, %s94
    %p106 = scmp.eq.s32.totalorder %s21, 1
    %p107 = por %p105, %p106
    %p109 = scmp.ne.s32.totalorder %s94, %s108
    %p110 = scmp.eq.s32.totalorder %s21, 0
    %p111 = por %p109, %p110
    %s113 = sadd.s32 %s112, 1
    %p116 = scmp.eq.s32.totalorder %s15, 1
    %p117 = scmp.ne.s32.totalorder %s112, %s114
    %p118 = scmp.eq.s32.totalorder %s15, 0
    %p119 = por %p117, %p118
    %p120 = scmp.ne.s32.totalorder %s112, %s114
    %p121 = scmp.eq.s32.totalorder %s20, 1
    %p122 = por %p120, %p121
    %p123 = scmp.ne.s32.totalorder %s114, %s115
    %p124 = scmp.eq.s32.totalorder %s20, 0
    %p125 = por %p123, %p124
    %p126 = scmp.ne.s32.totalorder %s114, %s115
    %p127 = scmp.eq.s32.totalorder %s21, 1
    %p128 = por %p126, %p127
    %p130 = scmp.ne.s32.totalorder %s115, %s129
    %p131 = scmp.eq.s32.totalorder %s21, 0
    %p132 = por %p130, %p131
    %s134 = sadd.s32 %s133, 1
    %p137 = scmp.eq.s32.totalorder %s15, 1
    %p138 = scmp.ne.s32.totalorder %s133, %s135
    %p139 = scmp.eq.s32.totalorder %s15, 0
    %p140 = por %p138, %p139
    %p141 = scmp.ne.s32.totalorder %s133, %s135
    %p142 = scmp.eq.s32.totalorder %s20, 1
    %p143 = por %p141, %p142
    %p144 = scmp.ne.s32.totalorder %s135, %s136
    %p145 = scmp.eq.s32.totalorder %s20, 0
    %p146 = por %p144, %p145
    %p147 = scmp.ne.s32.totalorder %s135, %s136
    %p148 = scmp.eq.s32.totalorder %s21, 1
    %p149 = por %p147, %p148
    %p151 = scmp.ne.s32.totalorder %s136, %s150
    %p152 = scmp.eq.s32.totalorder %s21, 0
    %p153 = por %p151, %p152
    %s155 = sadd.s32 %s154, 1
    %p158 = scmp.eq.s32.totalorder %s15, 1
    %p159 = scmp.ne.s32.totalorder %s154, %s156
    %p160 = scmp.eq.s32.totalorder %s15, 0
    %p161 = por %p159, %p160
    %p162 = scmp.ne.s32.totalorder %s154, %s156
    %p163 = scmp.eq.s32.totalorder %s20, 1
    %p164 = por %p162, %p163
    %p165 = scmp.ne.s32.totalorder %s156, %s157
    %p166 = scmp.eq.s32.totalorder %s20, 0
    %p167 = por %p165, %p166
    %p168 = scmp.ne.s32.totalorder %s156, %s157
    %p169 = scmp.eq.s32.totalorder %s21, 1
    %p170 = por %p168, %p169
    %p172 = scmp.ne.s32.totalorder %s157, %s171
    %p173 = scmp.eq.s32.totalorder %s21, 0
    %p174 = por %p172, %p173
    %s176 = sadd.s32 %s175, 1
    %p179 = scmp.eq.s32.totalorder %s15, 1
    %p180 = scmp.ne.s32.totalorder %s175, %s177
    %p181 = scmp.eq.s32.totalorder %s15, 0
    %p182 = por %p180, %p181
    %p183 = scmp.ne.s32.totalorder %s175, %s177
    %p184 = scmp.eq.s32.totalorder %s20, 1
    %p185 = por %p183, %p184
    %p186 = scmp.ne.s32.totalorder %s177, %s178
    %p187 = scmp.eq.s32.totalorder %s20, 0
    %p188 = por %p186, %p187
    %p189 = scmp.ne.s32.totalorder %s177, %s178
    %p190 = scmp.eq.s32.totalorder %s21, 1
    %p191 = por %p189, %p190
    %p193 = scmp.ne.s32.totalorder %s178, %s192
    %p194 = scmp.eq.s32.totalorder %s21, 0
    %p195 = por %p193, %p194
    %s197 = sadd.s32 %s196, 1
    %p200 = scmp.eq.s32.totalorder %s15, 1
    %p201 = scmp.ne.s32.totalorder %s196, %s198
    %p202 = scmp.eq.s32.totalorder %s15, 0
    %p203 = por %p201, %p202
    %p204 = scmp.ne.s32.totalorder %s196, %s198
    %p205 = scmp.eq.s32.totalorder %s20, 1
    %p206 = por %p204, %p205
    %p207 = scmp.ne.s32.totalorder %s198, %s199
    %p208 = scmp.eq.s32.totalorder %s20, 0
    %p209 = por %p207, %p208
    %p210 = scmp.ne.s32.totalorder %s198, %s199
    %p211 = scmp.eq.s32.totalorder %s21, 1
    %p212 = por %p210, %p211
    %p214 = scmp.ne.s32.totalorder %s199, %s213
    %p215 = scmp.eq.s32.totalorder %s21, 0
    %p216 = por %p214, %p215
    %s217 = ssub.s32 %s15, %s22
    %p218 = scmp.eq.s32.totalorder %s217, 0
    %s220 = sadd.s32 %s219, 1
    %s221 = scalar_select %p218, %s219, %s220
    %p224 = pneg %p218
    %p225 = scmp.eq.s32.totalorder %s15, 1
    %p226 = por %p224, %p225
    %p227 = scmp.ne.s32.totalorder %s219, %s222
    %p228 = scmp.eq.s32.totalorder %s15, 0
    %p229 = por %p227, %p228
    %p230 = scmp.ne.s32.totalorder %s219, %s222
    %p231 = scmp.eq.s32.totalorder %s20, 1
    %p232 = por %p230, %p231
    %p233 = scmp.ne.s32.totalorder %s222, %s223
    %p234 = scmp.eq.s32.totalorder %s20, 0
    %p235 = por %p233, %p234
    %p236 = scmp.ne.s32.totalorder %s222, %s223
    %p237 = scmp.eq.s32.totalorder %s21, 1
    %p238 = por %p236, %p237
    %p240 = scmp.ne.s32.totalorder %s223, %s239
    %p241 = scmp.eq.s32.totalorder %s21, 0
    %p242 = por %p240, %p241
    %p243 = scmp.le.s32.totalorder 1, %s15
    %p244 = scmp.lt.s32.totalorder %s15, 3
    %p245 = pnand %p243, %p244
    %p246 = pneg %p245
    // Predicated region
    $region9: #{dqn_forward_pallas.1} parent=5 // pred_check
      _
    $region10: #{dqn_forward_pallas.1} parent=5 // pred_check_branch
      %248 = sbr.rel (%p245) target = $region12
    $region11: #{dqn_forward_pallas.1} parent=5 // pred_region
      %s249 = ssub.s32 %s15, 1
      // Predicated region
      $region13: #{dqn_forward_pallas.1} parent=11 // pred_check
        %p250 = pneg %p62
      $region14: #{dqn_forward_pallas.1} parent=11 // pred_check_branch
        %252 = sbr.rel (%p250) target = $region16
      $region15: #{dqn_forward_pallas.1} parent=11 // pred_region
        _
      $region16: #{dqn_forward_pallas.1} parent=11 // pred_fallthru
        _
      // Predicated region
      $region17: #{dqn_forward_pallas.1} parent=11 // pred_check
        %p253 = pneg %p83
      $region18: #{dqn_forward_pallas.1} parent=11 // pred_check_branch
        %255 = sbr.rel (%p253) target = $region20
      $region19: #{dqn_forward_pallas.1} parent=11 // pred_region
        _
      $region20: #{dqn_forward_pallas.1} parent=11 // pred_fallthru
        _
      // Predicated region
      $region21: #{dqn_forward_pallas.1} parent=11 // pred_check
        %p256 = pneg %p104
      $region22: #{dqn_forward_pallas.1} parent=11 // pred_check_branch
        %258 = sbr.rel (%p256) target = $region24
      $region23: #{dqn_forward_pallas.1} parent=11 // pred_region
        _
      $region24: #{dqn_forward_pallas.1} parent=11 // pred_fallthru
        _
      // Predicated region
      $region25: #{dqn_forward_pallas.1} parent=11 // pred_check
        %p259 = pneg %p125
      $region26: #{dqn_forward_pallas.1} parent=11 // pred_check_branch
        %261 = sbr.rel (%p259) target = $region28
      $region27: #{dqn_forward_pallas.1} parent=11 // pred_region
        _
      $region28: #{dqn_forward_pallas.1} parent=11 // pred_fallthru
        _
      // Predicated region
      $region29: #{dqn_forward_pallas.1} parent=11 // pred_check
        %p262 = pneg %p146
      $region30: #{dqn_forward_pallas.1} parent=11 // pred_check_branch
        %264 = sbr.rel (%p262) target = $region32
      $region31: #{dqn_forward_pallas.1} parent=11 // pred_region
        _
      $region32: #{dqn_forward_pallas.1} parent=11 // pred_fallthru
        _
      // Predicated region
      $region33: #{dqn_forward_pallas.1} parent=11 // pred_check
        %p265 = pneg %p167
      $region34: #{dqn_forward_pallas.1} parent=11 // pred_check_branch
        %267 = sbr.rel (%p265) target = $region36
      $region35: #{dqn_forward_pallas.1} parent=11 // pred_region
        _
      $region36: #{dqn_forward_pallas.1} parent=11 // pred_fallthru
        _
      // Predicated region
      $region37: #{dqn_forward_pallas.1} parent=11 // pred_check
        %p268 = pneg %p188
      $region38: #{dqn_forward_pallas.1} parent=11 // pred_check_branch
        %270 = sbr.rel (%p268) target = $region40
      $region39: #{dqn_forward_pallas.1} parent=11 // pred_region
        _
      $region40: #{dqn_forward_pallas.1} parent=11 // pred_fallthru
        _
      // Predicated region
      $region41: #{dqn_forward_pallas.1} parent=11 // pred_check
        %p271 = pneg %p209
      $region42: #{dqn_forward_pallas.1} parent=11 // pred_check_branch
        %273 = sbr.rel (%p271) target = $region44
      $region43: #{dqn_forward_pallas.1} parent=11 // pred_region
        _
      $region44: #{dqn_forward_pallas.1} parent=11 // pred_fallthru
        _
    $region12: #{dqn_forward_pallas.1} parent=5 // pred_fallthru
      _
    %p274 = scmp.lt.s32.totalorder %s15, 2
    // Predicated region
    $region45: #{dqn_forward_pallas.1} parent=5 // pred_check
      %p275 = pneg %p274
    $region46: #{dqn_forward_pallas.1} parent=5 // pred_check_branch
      %277 = sbr.rel (%p275) target = $region48
    $region47: #{dqn_forward_pallas.1} parent=5 // pred_region
      // Predicated region
      $region49: #{dqn_forward_pallas.1} parent=47 // pred_check
        %p278 = pneg %p35
      $region50: #{dqn_forward_pallas.1} parent=47 // pred_check_branch
        %280 = sbr.rel (%p278) target = $region52
      $region51: #{dqn_forward_pallas.1} parent=47 // pred_region
        %s281 = smul.u32 32, %s15
        %p282 = scmp.lt.s32.totalorder %s281, 63
        %s283 = scalar_select %p282, %s281, 63
        %s284 = smul.addr %s283, 4
        %s285 = scalar_lea.vmem %s0, %s284
        %s286 = smul.u32 32, %s15
      $region52: #{dqn_forward_pallas.1} parent=47 // pred_fallthru
        _
    $region48: #{dqn_forward_pallas.1} parent=5 // pred_fallthru
      _
    %p287 = scmp.le.s32.totalorder 1, %s15
    %p288 = scmp.lt.s32.totalorder %s15, 3
    %p289 = pnand %p287, %p288
    %p290 = pneg %p289
    // Predicated region
    $region53: #{dqn_forward_pallas.1} parent=5 // pred_check
      _
    $region54: #{dqn_forward_pallas.1} parent=5 // pred_check_branch
      %292 = sbr.rel (%p289) target = $region56
    $region55: #{dqn_forward_pallas.1} parent=5 // pred_region
      %s293 = ssub.s32 %s15, 1
      %s294 = smul.u32 32, %s20
      %p295 = scmp.lt.s32.totalorder %s294, 63
      %s296 = scalar_select %p295, %s294, 63
      %s297 = smul.addr %s296, 4
      %s298 = scalar_lea.vmem %s0, %s297
      %p299 = pneg %p41
      %p300 = pneg %p38
      %p301 = pneg %p62
      %p302 = pneg %p59
      %p303 = pneg %p83
      %p304 = pneg %p80
      %p305 = pneg %p104
      %p306 = pneg %p101
      %p307 = pneg %p125
      %p308 = pneg %p122
      %p309 = pneg %p146
      %p310 = pneg %p143
      %p311 = pneg %p167
      %p312 = pneg %p164
      %p313 = pneg %p188
      %p314 = pneg %p185
      %p315 = pneg %p209
      %p316 = pneg %p206
      %p317 = pneg %p235
      %p318 = pneg %p232
      %s319 = smul.u32 32, %s20
      %p320 = scmp.lt.s32.totalorder %s319, 63
      %s321 = scalar_select %p320, %s319, 63
      %s322 = smul.addr %s321, 8
      %s323 = scalar_lea.vmem %s9, %s322
      %s324 = smul.u32 32, %s20
      %p325 = scmp.lt.s32.totalorder %s324, 63
      %s326 = scalar_select %p325, %s324, 63
      %s327 = smul.addr %s326, 4
      %s328 = scalar_lea.vmem %s0, %s327
      %s329 = smul.u32 32, %s20
      %s330 = smul.u32 32, %s20
      %p331 = scmp.lt.s32.totalorder %s330, 63
      %s332 = scalar_select %p331, %s330, 63
      %s333 = smul.addr %s332, 8
      %s334 = scalar_lea.vmem %s9, %s333
      %s335 = smul.u32 32, %s20
      %v337 = vld [vmem:[%s328] sm:$0xf]
      %v338 = vld [vmem:[%s328 + $0x4] sm:$0xf]
      %v339 = vld [vmem:[%s328 + $0x8] sm:$0xf]
      %v340 = vld [vmem:[%s328 + $0xc] sm:$0xf]
      %v341 = vld [vmem:[%s328 + $0x10] sm:$0xf]
      %v342 = vld [vmem:[%s328 + $0x14] sm:$0xf]
      %v343 = vld [vmem:[%s328 + $0x18] sm:$0xf]
      %v344 = vld [vmem:[%s328 + $0x1c] sm:$0xf]
      %v345 = vld [vmem:[%s328 + $0x20] sm:$0xf]
      %v346 = vld [vmem:[%s328 + $0x24] sm:$0xf]
      %v347 = vld [vmem:[%s328 + $0x28] sm:$0xf]
      %v348 = vld [vmem:[%s328 + $0x2c] sm:$0xf]
      %v349 = vld [vmem:[%s328 + $0x30] sm:$0xf]
      %v350 = vld [vmem:[%s328 + $0x34] sm:$0xf]
      %v351 = vld [vmem:[%s328 + $0x38] sm:$0xf]
      %v352 = vld [vmem:[%s328 + $0x3c] sm:$0xf]
      %v353 = vld [vmem:[%s328 + $0x40] sm:$0xf]
      %v354 = vld [vmem:[%s328 + $0x44] sm:$0xf]
      %v355 = vld [vmem:[%s328 + $0x48] sm:$0xf]
      %v356 = vld [vmem:[%s328 + $0x4c] sm:$0xf]
      %v357 = vld [vmem:[%s328 + $0x50] sm:$0xf]
      %v358 = vld [vmem:[%s328 + $0x54] sm:$0xf]
      %v359 = vld [vmem:[%s328 + $0x58] sm:$0xf]
      %v360 = vld [vmem:[%s328 + $0x5c] sm:$0xf]
      %v361 = vld [vmem:[%s328 + $0x60] sm:$0xf]
      %v362 = vld [vmem:[%s328 + $0x64] sm:$0xf]
      %v363 = vld [vmem:[%s328 + $0x68] sm:$0xf]
      %v364 = vld [vmem:[%s328 + $0x6c] sm:$0xf]
      %v365 = vld [vmem:[%s328 + $0x70] sm:$0xf]
      %v366 = vld [vmem:[%s328 + $0x74] sm:$0xf]
      %v367 = vld [vmem:[%s328 + $0x78] sm:$0xf]
      %v368 = vld [vmem:[%s328 + $0x7c] sm:$0xf]
      %v369 = vld [vmem:[%s1] sm:$0xf]
      %v370 = vld [vmem:[%s2] sm:$0x1]
      %v372 = vlaneseq
      %v373 = vshrl.u32 %v372, 7
      %v374 = vsub.s32 0, %v373
      %v375 = vrot.slane %v370, %v374
      %v409 = vunpack.c.l.b16 %v337
      %v410 = vunpack.c.l.b16 %v338
      %v411 = vunpack.c.l.b16 %v339
      %v412 = vunpack.c.l.b16 %v340
      %v413 = vunpack.c.l.b16 %v341
      %v414 = vunpack.c.l.b16 %v342
      %v415 = vunpack.c.l.b16 %v343
      %v416 = vunpack.c.l.b16 %v344
      %v417 = vunpack.c.l.b16 %v345
      %v418 = vunpack.c.l.b16 %v346
      %v419 = vunpack.c.l.b16 %v347
      %v420 = vunpack.c.l.b16 %v348
      %v421 = vunpack.c.l.b16 %v349
      %v422 = vunpack.c.l.b16 %v350
      %v423 = vunpack.c.l.b16 %v351
      %v424 = vunpack.c.l.b16 %v352
      %v425 = vunpack.c.l.b16 %v353
      %v426 = vunpack.c.l.b16 %v354
      %v427 = vunpack.c.l.b16 %v355
      %v428 = vunpack.c.l.b16 %v356
      %v429 = vunpack.c.l.b16 %v357
      %v430 = vunpack.c.l.b16 %v358
      %v431 = vunpack.c.l.b16 %v359
      %v432 = vunpack.c.l.b16 %v360
      %v433 = vunpack.c.l.b16 %v361
      %v434 = vunpack.c.l.b16 %v362
      %v435 = vunpack.c.l.b16 %v363
      %v436 = vunpack.c.l.b16 %v364
      %v437 = vunpack.c.l.b16 %v365
      %v438 = vunpack.c.l.b16 %v366
      %v439 = vunpack.c.l.b16 %v367
      %v440 = vunpack.c.l.b16 %v368
      %v441 = vpack.c.b16 %v410, %v409
      %v442 = vpack.c.b16 %v412, %v411
      %v443 = vpack.c.b16 %v414, %v413
      %v444 = vpack.c.b16 %v416, %v415
      %v445 = vpack.c.b16 %v418, %v417
      %v446 = vpack.c.b16 %v420, %v419
      %v447 = vpack.c.b16 %v422, %v421
      %v448 = vpack.c.b16 %v424, %v423
      %v449 = vpack.c.b16 %v426, %v425
      %v450 = vpack.c.b16 %v428, %v427
      %v451 = vpack.c.b16 %v430, %v429
      %v452 = vpack.c.b16 %v432, %v431
      %v453 = vpack.c.b16 %v434, %v433
      %v454 = vpack.c.b16 %v436, %v435
      %v455 = vpack.c.b16 %v438, %v437
      %v456 = vpack.c.b16 %v440, %v439
      %vm457 = vcmask 64512
      %v459 = vsel %vm457, %v441, 0
      %v462 = vsel %vm457, %v442, 0
      %v465 = vsel %vm457, %v443, 0
      %v468 = vsel %vm457, %v444, 0
      %v471 = vsel %vm457, %v445, 0
      %v474 = vsel %vm457, %v446, 0
      %v477 = vsel %vm457, %v447, 0
      %v480 = vsel %vm457, %v448, 0
      %v483 = vsel %vm457, %v449, 0
      %v486 = vsel %vm457, %v450, 0
      %v489 = vsel %vm457, %v451, 0
      %v492 = vsel %vm457, %v452, 0
      %v495 = vsel %vm457, %v453, 0
      %v498 = vsel %vm457, %v454, 0
      %v501 = vsel %vm457, %v455, 0
      %v504 = vsel %vm457, %v456, 0
      %vm506 = vcmask 1043456
      %v508 = vsel %vm506, %v369, 0
      %510 = vmatprep.subr.bf16.mxu0 0
      %511 = vmatpush1.bf16.msra.mxu0 0
      %512 = vmatprep.subr.bf16.mxu0 0
      %513 = vmatpush1.bf16.msra.mxu0 0
      %514 = vmatprep.subr.bf16.mxu0 0
      %515 = vmatpush1.bf16.msra.mxu0 0
      %516 = vmatprep.subr.bf16.mxu0 0
      %517 = vmatpush1.bf16.msra.mxu0 0
      %518 = vmatprep.subr.bf16.mxu0 0
      %519 = vmatpush1.bf16.msra.mxu0 0
      %520 = vmatprep.subr.bf16.mxu0 0
      %521 = vmatpush1.bf16.msra.mxu0 0
      %522 = vmatprep.subr.bf16.mxu0 0
      %523 = vmatpush1.bf16.msra.mxu0 0
      %524 = vmatprep.subr.bf16.mxu0 0
      %525 = vmatpush1.bf16.msra.mxu0 %v508
      %526 = vmatprep.subr.bf16.mxu0 0
      %527 = vmatpush2.bf16.msra.mxu0 0
      %528 = vmatprep.subr.bf16.mxu0 0
      %529 = vmatpush2.bf16.msra.mxu0 0
      %530 = vmatprep.subr.bf16.mxu0 0
      %531 = vmatpush2.bf16.msra.mxu0 0
      %532 = vmatprep.subr.bf16.mxu0 0
      %533 = vmatpush2.bf16.msra.mxu0 0
      %534 = vmatprep.subr.bf16.mxu0 0
      %535 = vmatpush2.bf16.msra.mxu0 0
      %536 = vmatprep.subr.bf16.mxu0 0
      %537 = vmatpush2.bf16.msra.mxu0 0
      %538 = vmatprep.subr.bf16.mxu0 0
      %539 = vmatpush2.bf16.msra.mxu0 0
      %540 = vmatprep.subr.bf16.mxu0 0
      %541 = vmatpush2.bf16.msra.mxu0 0
      %542 = vmatprep.mubr.bf16.mxu0 0
      %543 = vmatmul.mubr.bf16.gmra.mxu0 %v459
      %v544 = vpop.f32.mrf.mxu0
      %v545 = vadd.f32 %v375, %v544
      %v546 = vpop.f32.mrf.mxu0
      %v547 = vpop.f32.mrf.mxu0
      %v548 = vadd.f32 %v375, %v547
      %v549 = vpop.f32.mrf.mxu0
      %550 = vmatprep.mubr.bf16.mxu0 0
      %551 = vmatmul.mubr.bf16.gmra.mxu0 %v462
      %v552 = vpop.f32.mrf.mxu0
      %v553 = vadd.f32 %v375, %v552
      %v554 = vpop.f32.mrf.mxu0
      %v555 = vpop.f32.mrf.mxu0
      %v556 = vadd.f32 %v375, %v555
      %v557 = vpop.f32.mrf.mxu0
      %558 = vmatprep.mubr.bf16.mxu0 0
      %559 = vmatmul.mubr.bf16.gmra.mxu0 %v465
      %v560 = vpop.f32.mrf.mxu0
      %v561 = vadd.f32 %v375, %v560
      %v562 = vpop.f32.mrf.mxu0
      %v563 = vpop.f32.mrf.mxu0
      %v564 = vadd.f32 %v375, %v563
      %v565 = vpop.f32.mrf.mxu0
      %566 = vmatprep.mubr.bf16.mxu0 0
      %567 = vmatmul.mubr.bf16.gmra.mxu0 %v468
      %v568 = vpop.f32.mrf.mxu0
      %v569 = vadd.f32 %v375, %v568
      %v570 = vpop.f32.mrf.mxu0
      %v571 = vpop.f32.mrf.mxu0
      %v572 = vadd.f32 %v375, %v571
      %v573 = vpop.f32.mrf.mxu0
      %574 = vmatprep.mubr.bf16.mxu0 0
      %575 = vmatmul.mubr.bf16.gmra.mxu0 %v471
      %v576 = vpop.f32.mrf.mxu0
      %v577 = vadd.f32 %v375, %v576
      %v578 = vpop.f32.mrf.mxu0
      %v579 = vpop.f32.mrf.mxu0
      %v580 = vadd.f32 %v375, %v579
      %v581 = vpop.f32.mrf.mxu0
      %582 = vmatprep.mubr.bf16.mxu0 0
      %583 = vmatmul.mubr.bf16.gmra.mxu0 %v474
      %v584 = vpop.f32.mrf.mxu0
      %v585 = vadd.f32 %v375, %v584
      %v586 = vpop.f32.mrf.mxu0
      %v587 = vpop.f32.mrf.mxu0
      %v588 = vadd.f32 %v375, %v587
      %v589 = vpop.f32.mrf.mxu0
      %590 = vmatprep.mubr.bf16.mxu0 0
      %591 = vmatmul.mubr.bf16.gmra.mxu0 %v477
      %v592 = vpop.f32.mrf.mxu0
      %v593 = vadd.f32 %v375, %v592
      %v594 = vpop.f32.mrf.mxu0
      %v595 = vpop.f32.mrf.mxu0
      %v596 = vadd.f32 %v375, %v595
      %v597 = vpop.f32.mrf.mxu0
      %598 = vmatprep.mubr.bf16.mxu0 0
      %599 = vmatmul.mubr.bf16.gmra.mxu0 %v480
      %v600 = vpop.f32.mrf.mxu0
      %v601 = vadd.f32 %v375, %v600
      %v602 = vpop.f32.mrf.mxu0
      %v603 = vpop.f32.mrf.mxu0
      %v604 = vadd.f32 %v375, %v603
      %v605 = vpop.f32.mrf.mxu0
      %606 = vmatprep.mubr.bf16.mxu0 0
      %607 = vmatmul.mubr.bf16.gmra.mxu0 %v483
      %v608 = vpop.f32.mrf.mxu0
      %v609 = vadd.f32 %v375, %v608
      %v610 = vpop.f32.mrf.mxu0
      %v611 = vpop.f32.mrf.mxu0
      %v612 = vadd.f32 %v375, %v611
      %v613 = vpop.f32.mrf.mxu0
      %614 = vmatprep.mubr.bf16.mxu0 0
      %615 = vmatmul.mubr.bf16.gmra.mxu0 %v486
      %v616 = vpop.f32.mrf.mxu0
      %v617 = vadd.f32 %v375, %v616
      %v618 = vpop.f32.mrf.mxu0
      %v619 = vpop.f32.mrf.mxu0
      %v620 = vadd.f32 %v375, %v619
      %v621 = vpop.f32.mrf.mxu0
      %622 = vmatprep.mubr.bf16.mxu0 0
      %623 = vmatmul.mubr.bf16.gmra.mxu0 %v489
      %v624 = vpop.f32.mrf.mxu0
      %v625 = vadd.f32 %v375, %v624
      %v626 = vpop.f32.mrf.mxu0
      %v627 = vpop.f32.mrf.mxu0
      %v628 = vadd.f32 %v375, %v627
      %v629 = vpop.f32.mrf.mxu0
      %630 = vmatprep.mubr.bf16.mxu0 0
      %631 = vmatmul.mubr.bf16.gmra.mxu0 %v492
      %v632 = vpop.f32.mrf.mxu0
      %v633 = vadd.f32 %v375, %v632
      %v634 = vpop.f32.mrf.mxu0
      %v635 = vpop.f32.mrf.mxu0
      %v636 = vadd.f32 %v375, %v635
      %v637 = vpop.f32.mrf.mxu0
      %638 = vmatprep.mubr.bf16.mxu0 0
      %639 = vmatmul.mubr.bf16.gmra.mxu0 %v495
      %v640 = vpop.f32.mrf.mxu0
      %v641 = vadd.f32 %v375, %v640
      %v642 = vpop.f32.mrf.mxu0
      %v643 = vpop.f32.mrf.mxu0
      %v644 = vadd.f32 %v375, %v643
      %v645 = vpop.f32.mrf.mxu0
      %646 = vmatprep.mubr.bf16.mxu0 0
      %647 = vmatmul.mubr.bf16.gmra.mxu0 %v498
      %v648 = vpop.f32.mrf.mxu0
      %v649 = vadd.f32 %v375, %v648
      %v650 = vpop.f32.mrf.mxu0
      %v651 = vpop.f32.mrf.mxu0
      %v652 = vadd.f32 %v375, %v651
      %v653 = vpop.f32.mrf.mxu0
      %654 = vmatprep.mubr.bf16.mxu0 0
      %655 = vmatmul.mubr.bf16.gmra.mxu0 %v501
      %v656 = vpop.f32.mrf.mxu0
      %v657 = vadd.f32 %v375, %v656
      %v658 = vpop.f32.mrf.mxu0
      %v659 = vpop.f32.mrf.mxu0
      %v660 = vadd.f32 %v375, %v659
      %v661 = vpop.f32.mrf.mxu0
      %662 = vmatprep.mubr.bf16.mxu0 0
      %663 = vmatmul.mubr.bf16.gmra.mxu0 %v504
      %v664 = vpop.f32.mrf.mxu0
      %v665 = vadd.f32 %v375, %v664
      %v666 = vpop.f32.mrf.mxu0
      %v667 = vpop.f32.mrf.mxu0
      %v668 = vadd.f32 %v375, %v667
      %v669 = vpop.f32.mrf.mxu0
      %670 = vdwg.mxu0
      %v671 = vmax.f32 %v545, 0.0
      %v672 = vmax.f32 %v548, 0.0
      %v673 = vmax.f32 %v553, 0.0
      %v674 = vmax.f32 %v556, 0.0
      %v675 = vmax.f32 %v561, 0.0
      %v676 = vmax.f32 %v564, 0.0
      %v677 = vmax.f32 %v569, 0.0
      %v678 = vmax.f32 %v572, 0.0
      %v679 = vmax.f32 %v577, 0.0
      %v680 = vmax.f32 %v580, 0.0
      %v681 = vmax.f32 %v585, 0.0
      %v682 = vmax.f32 %v588, 0.0
      %v683 = vmax.f32 %v593, 0.0
      %v684 = vmax.f32 %v596, 0.0
      %v685 = vmax.f32 %v601, 0.0
      %v686 = vmax.f32 %v604, 0.0
      %v687 = vmax.f32 %v609, 0.0
      %v688 = vmax.f32 %v612, 0.0
      %v689 = vmax.f32 %v617, 0.0
      %v690 = vmax.f32 %v620, 0.0
      %v691 = vmax.f32 %v625, 0.0
      %v692 = vmax.f32 %v628, 0.0
      %v693 = vmax.f32 %v633, 0.0
      %v694 = vmax.f32 %v636, 0.0
      %v695 = vmax.f32 %v641, 0.0
      %v696 = vmax.f32 %v644, 0.0
      %v697 = vmax.f32 %v649, 0.0
      %v698 = vmax.f32 %v652, 0.0
      %v699 = vmax.f32 %v657, 0.0
      %v700 = vmax.f32 %v660, 0.0
      %v701 = vmax.f32 %v665, 0.0
      %v702 = vmax.f32 %v668, 0.0
      %v703 = vpack.c.bf16 %v672, %v671
      %v704 = vpack.c.bf16 %v674, %v673
      %v705 = vpack.c.bf16 %v676, %v675
      %v706 = vpack.c.bf16 %v678, %v677
      %v707 = vpack.c.bf16 %v680, %v679
      %v708 = vpack.c.bf16 %v682, %v681
      %v709 = vpack.c.bf16 %v684, %v683
      %v710 = vpack.c.bf16 %v686, %v685
      %v711 = vpack.c.bf16 %v688, %v687
      %v712 = vpack.c.bf16 %v690, %v689
      %v713 = vpack.c.bf16 %v692, %v691
      %v714 = vpack.c.bf16 %v694, %v693
      %v715 = vpack.c.bf16 %v696, %v695
      %v716 = vpack.c.bf16 %v698, %v697
      %v717 = vpack.c.bf16 %v700, %v699
      %v718 = vpack.c.bf16 %v702, %v701
      %v719 = vld [vmem:[%s3] sm:$0xf]
      %v720 = vld [vmem:[%s3 + $0x4] sm:$0xf]
      %v721 = vld [vmem:[%s3 + $0x8] sm:$0xf]
      %v722 = vld [vmem:[%s3 + $0xc] sm:$0xf]
      %v723 = vld [vmem:[%s3 + $0x10] sm:$0xf]
      %v724 = vld [vmem:[%s3 + $0x14] sm:$0xf]
      %v725 = vld [vmem:[%s3 + $0x18] sm:$0xf]
      %v726 = vld [vmem:[%s3 + $0x1c] sm:$0xf]
      %v727 = vld [vmem:[%s3 + $0x20] sm:$0xf]
      %v728 = vld [vmem:[%s3 + $0x24] sm:$0xf]
      %v729 = vld [vmem:[%s3 + $0x28] sm:$0xf]
      %v730 = vld [vmem:[%s3 + $0x2c] sm:$0xf]
      %v731 = vld [vmem:[%s3 + $0x30] sm:$0xf]
      %v732 = vld [vmem:[%s3 + $0x34] sm:$0xf]
      %v733 = vld [vmem:[%s3 + $0x38] sm:$0xf]
      %v734 = vld [vmem:[%s3 + $0x3c] sm:$0xf]
      %v735 = vld [vmem:[%s4] sm:$0x1]
      %v737 = vlaneseq
      %v738 = vshrl.u32 %v737, 7
      %v739 = vsub.s32 0, %v738
      %v740 = vrot.slane %v735, %v739
      %v758 = vunpack.c.l.b16 %v719
      %v759 = vunpack.c.l.b16 %v720
      %v760 = vunpack.c.l.b16 %v721
      %v761 = vunpack.c.l.b16 %v722
      %v762 = vunpack.c.l.b16 %v723
      %v763 = vunpack.c.l.b16 %v724
      %v764 = vunpack.c.l.b16 %v725
      %v765 = vunpack.c.l.b16 %v726
      %v766 = vunpack.c.l.b16 %v727
      %v767 = vunpack.c.l.b16 %v728
      %v768 = vunpack.c.l.b16 %v729
      %v769 = vunpack.c.l.b16 %v730
      %v770 = vunpack.c.l.b16 %v731
      %v771 = vunpack.c.l.b16 %v732
      %v772 = vunpack.c.l.b16 %v733
      %v773 = vunpack.c.l.b16 %v734
      %v774 = vpack.c.b16 %v759, %v758
      %v775 = vpack.c.b16 %v761, %v760
      %v776 = vpack.c.b16 %v763, %v762
      %v777 = vpack.c.b16 %v765, %v764
      %v778 = vpack.c.b16 %v767, %v766
      %v779 = vpack.c.b16 %v769, %v768
      %v780 = vpack.c.b16 %v771, %v770
      %v781 = vpack.c.b16 %v773, %v772
      %790 = vmatprep.subr.bf16.mxu0 0
      %791 = vmatpush1.bf16.msra.mxu0 %v781
      %792 = vmatprep.subr.bf16.mxu0 0
      %793 = vmatpush1.bf16.msra.mxu0 %v780
      %794 = vmatprep.subr.bf16.mxu0 0
      %795 = vmatpush1.bf16.msra.mxu0 %v779
      %796 = vmatprep.subr.bf16.mxu0 0
      %797 = vmatpush1.bf16.msra.mxu0 %v778
      %798 = vmatprep.subr.bf16.mxu0 0
      %799 = vmatpush1.bf16.msra.mxu0 %v777
      %800 = vmatprep.subr.bf16.mxu0 0
      %801 = vmatpush1.bf16.msra.mxu0 %v776
      %802 = vmatprep.subr.bf16.mxu0 0
      %803 = vmatpush1.bf16.msra.mxu0 %v775
      %804 = vmatprep.subr.bf16.mxu0 0
      %805 = vmatpush1.bf16.msra.mxu0 %v774
      %806 = vmatprep.subr.bf16.mxu0 0
      %807 = vmatpush2.bf16.msra.mxu0 0
      %808 = vmatprep.subr.bf16.mxu0 0
      %809 = vmatpush2.bf16.msra.mxu0 0
      %810 = vmatprep.subr.bf16.mxu0 0
      %811 = vmatpush2.bf16.msra.mxu0 0
      %812 = vmatprep.subr.bf16.mxu0 0
      %813 = vmatpush2.bf16.msra.mxu0 0
      %814 = vmatprep.subr.bf16.mxu0 0
      %815 = vmatpush2.bf16.msra.mxu0 0
      %816 = vmatprep.subr.bf16.mxu0 0
      %817 = vmatpush2.bf16.msra.mxu0 0
      %818 = vmatprep.subr.bf16.mxu0 0
      %819 = vmatpush2.bf16.msra.mxu0 0
      %820 = vmatprep.subr.bf16.mxu0 0
      %821 = vmatpush2.bf16.msra.mxu0 0
      %822 = vmatprep.mubr.bf16.mxu0 0
      %823 = vmatmul.mubr.bf16.gmra.mxu0 %v703
      %v824 = vpop.f32.mrf.mxu0
      %v825 = vadd.f32 %v740, %v824
      %v826 = vpop.f32.mrf.mxu0
      %v827 = vpop.f32.mrf.mxu0
      %v828 = vadd.f32 %v740, %v827
      %v829 = vpop.f32.mrf.mxu0
      %830 = vmatprep.mubr.bf16.mxu0 0
      %831 = vmatmul.mubr.bf16.gmra.mxu0 %v704
      %v832 = vpop.f32.mrf.mxu0
      %v833 = vadd.f32 %v740, %v832
      %v834 = vpop.f32.mrf.mxu0
      %v835 = vpop.f32.mrf.mxu0
      %v836 = vadd.f32 %v740, %v835
      %v837 = vpop.f32.mrf.mxu0
      %838 = vmatprep.mubr.bf16.mxu0 0
      %839 = vmatmul.mubr.bf16.gmra.mxu0 %v705
      %v840 = vpop.f32.mrf.mxu0
      %v841 = vadd.f32 %v740, %v840
      %v842 = vpop.f32.mrf.mxu0
      %v843 = vpop.f32.mrf.mxu0
      %v844 = vadd.f32 %v740, %v843
      %v845 = vpop.f32.mrf.mxu0
      %846 = vmatprep.mubr.bf16.mxu0 0
      %847 = vmatmul.mubr.bf16.gmra.mxu0 %v706
      %v848 = vpop.f32.mrf.mxu0
      %v849 = vadd.f32 %v740, %v848
      %v850 = vpop.f32.mrf.mxu0
      %v851 = vpop.f32.mrf.mxu0
      %v852 = vadd.f32 %v740, %v851
      %v853 = vpop.f32.mrf.mxu0
      %854 = vmatprep.mubr.bf16.mxu0 0
      %855 = vmatmul.mubr.bf16.gmra.mxu0 %v707
      %v856 = vpop.f32.mrf.mxu0
      %v857 = vadd.f32 %v740, %v856
      %v858 = vpop.f32.mrf.mxu0
      %v859 = vpop.f32.mrf.mxu0
      %v860 = vadd.f32 %v740, %v859
      %v861 = vpop.f32.mrf.mxu0
      %862 = vmatprep.mubr.bf16.mxu0 0
      %863 = vmatmul.mubr.bf16.gmra.mxu0 %v708
      %v864 = vpop.f32.mrf.mxu0
      %v865 = vadd.f32 %v740, %v864
      %v866 = vpop.f32.mrf.mxu0
      %v867 = vpop.f32.mrf.mxu0
      %v868 = vadd.f32 %v740, %v867
      %v869 = vpop.f32.mrf.mxu0
      %870 = vmatprep.mubr.bf16.mxu0 0
      %871 = vmatmul.mubr.bf16.gmra.mxu0 %v709
      %v872 = vpop.f32.mrf.mxu0
      %v873 = vadd.f32 %v740, %v872
      %v874 = vpop.f32.mrf.mxu0
      %v875 = vpop.f32.mrf.mxu0
      %v876 = vadd.f32 %v740, %v875
      %v877 = vpop.f32.mrf.mxu0
      %878 = vmatprep.mubr.bf16.mxu0 0
      %879 = vmatmul.mubr.bf16.gmra.mxu0 %v710
      %v880 = vpop.f32.mrf.mxu0
      %v881 = vadd.f32 %v740, %v880
      %v882 = vpop.f32.mrf.mxu0
      %v883 = vpop.f32.mrf.mxu0
      %v884 = vadd.f32 %v740, %v883
      %v885 = vpop.f32.mrf.mxu0
      %886 = vmatprep.mubr.bf16.mxu0 0
      %887 = vmatmul.mubr.bf16.gmra.mxu0 %v711
      %v888 = vpop.f32.mrf.mxu0
      %v889 = vadd.f32 %v740, %v888
      %v890 = vpop.f32.mrf.mxu0
      %v891 = vpop.f32.mrf.mxu0
      %v892 = vadd.f32 %v740, %v891
      %v893 = vpop.f32.mrf.mxu0
      %894 = vmatprep.mubr.bf16.mxu0 0
      %895 = vmatmul.mubr.bf16.gmra.mxu0 %v712
      %v896 = vpop.f32.mrf.mxu0
      %v897 = vadd.f32 %v740, %v896
      %v898 = vpop.f32.mrf.mxu0
      %v899 = vpop.f32.mrf.mxu0
      %v900 = vadd.f32 %v740, %v899
      %v901 = vpop.f32.mrf.mxu0
      %902 = vmatprep.mubr.bf16.mxu0 0
      %903 = vmatmul.mubr.bf16.gmra.mxu0 %v713
      %v904 = vpop.f32.mrf.mxu0
      %v905 = vadd.f32 %v740, %v904
      %v906 = vpop.f32.mrf.mxu0
      %v907 = vpop.f32.mrf.mxu0
      %v908 = vadd.f32 %v740, %v907
      %v909 = vpop.f32.mrf.mxu0
      %910 = vmatprep.mubr.bf16.mxu0 0
      %911 = vmatmul.mubr.bf16.gmra.mxu0 %v714
      %v912 = vpop.f32.mrf.mxu0
      %v913 = vadd.f32 %v740, %v912
      %v914 = vpop.f32.mrf.mxu0
      %v915 = vpop.f32.mrf.mxu0
      %v916 = vadd.f32 %v740, %v915
      %v917 = vpop.f32.mrf.mxu0
      %918 = vmatprep.mubr.bf16.mxu0 0
      %919 = vmatmul.mubr.bf16.gmra.mxu0 %v715
      %v920 = vpop.f32.mrf.mxu0
      %v921 = vadd.f32 %v740, %v920
      %v922 = vpop.f32.mrf.mxu0
      %v923 = vpop.f32.mrf.mxu0
      %v924 = vadd.f32 %v740, %v923
      %v925 = vpop.f32.mrf.mxu0
      %926 = vmatprep.mubr.bf16.mxu0 0
      %927 = vmatmul.mubr.bf16.gmra.mxu0 %v716
      %v928 = vpop.f32.mrf.mxu0
      %v929 = vadd.f32 %v740, %v928
      %v930 = vpop.f32.mrf.mxu0
      %v931 = vpop.f32.mrf.mxu0
      %v932 = vadd.f32 %v740, %v931
      %v933 = vpop.f32.mrf.mxu0
      %934 = vmatprep.mubr.bf16.mxu0 0
      %935 = vmatmul.mubr.bf16.gmra.mxu0 %v717
      %v936 = vpop.f32.mrf.mxu0
      %v937 = vadd.f32 %v740, %v936
      %v938 = vpop.f32.mrf.mxu0
      %v939 = vpop.f32.mrf.mxu0
      %v940 = vadd.f32 %v740, %v939
      %v941 = vpop.f32.mrf.mxu0
      %942 = vmatprep.mubr.bf16.mxu0 0
      %943 = vmatmul.mubr.bf16.gmra.mxu0 %v718
      %v944 = vpop.f32.mrf.mxu0
      %v945 = vadd.f32 %v740, %v944
      %v946 = vpop.f32.mrf.mxu0
      %v947 = vpop.f32.mrf.mxu0
      %v948 = vadd.f32 %v740, %v947
      %v949 = vpop.f32.mrf.mxu0
      %950 = vdwg.mxu0
      %v951 = vmax.f32 %v825, 0.0
      %v952 = vmax.f32 %v828, 0.0
      %v953 = vmax.f32 %v833, 0.0
      %v954 = vmax.f32 %v836, 0.0
      %v955 = vmax.f32 %v841, 0.0
      %v956 = vmax.f32 %v844, 0.0
      %v957 = vmax.f32 %v849, 0.0
      %v958 = vmax.f32 %v852, 0.0
      %v959 = vmax.f32 %v857, 0.0
      %v960 = vmax.f32 %v860, 0.0
      %v961 = vmax.f32 %v865, 0.0
      %v962 = vmax.f32 %v868, 0.0
      %v963 = vmax.f32 %v873, 0.0
      %v964 = vmax.f32 %v876, 0.0
      %v965 = vmax.f32 %v881, 0.0
      %v966 = vmax.f32 %v884, 0.0
      %v967 = vmax.f32 %v889, 0.0
      %v968 = vmax.f32 %v892, 0.0
      %v969 = vmax.f32 %v897, 0.0
      %v970 = vmax.f32 %v900, 0.0
      %v971 = vmax.f32 %v905, 0.0
      %v972 = vmax.f32 %v908, 0.0
      %v973 = vmax.f32 %v913, 0.0
      %v974 = vmax.f32 %v916, 0.0
      %v975 = vmax.f32 %v921, 0.0
      %v976 = vmax.f32 %v924, 0.0
      %v977 = vmax.f32 %v929, 0.0
      %v978 = vmax.f32 %v932, 0.0
      %v979 = vmax.f32 %v937, 0.0
      %v980 = vmax.f32 %v940, 0.0
      %v981 = vmax.f32 %v945, 0.0
      %v982 = vmax.f32 %v948, 0.0
      %v983 = vpack.c.bf16 %v952, %v951
      %v984 = vpack.c.bf16 %v954, %v953
      %v985 = vpack.c.bf16 %v956, %v955
      %v986 = vpack.c.bf16 %v958, %v957
      %v987 = vpack.c.bf16 %v960, %v959
      %v988 = vpack.c.bf16 %v962, %v961
      %v989 = vpack.c.bf16 %v964, %v963
      %v990 = vpack.c.bf16 %v966, %v965
      %v991 = vpack.c.bf16 %v968, %v967
      %v992 = vpack.c.bf16 %v970, %v969
      %v993 = vpack.c.bf16 %v972, %v971
      %v994 = vpack.c.bf16 %v974, %v973
      %v995 = vpack.c.bf16 %v976, %v975
      %v996 = vpack.c.bf16 %v978, %v977
      %v997 = vpack.c.bf16 %v980, %v979
      %v998 = vpack.c.bf16 %v982, %v981
      %v999 = vld [vmem:[%s5] sm:$0xf]
      %v1000 = vld [vmem:[%s5 + $0x4] sm:$0xf]
      %v1001 = vld [vmem:[%s5 + $0x8] sm:$0xf]
      %v1002 = vld [vmem:[%s5 + $0xc] sm:$0xf]
      %v1003 = vld [vmem:[%s5 + $0x10] sm:$0xf]
      %v1004 = vld [vmem:[%s5 + $0x14] sm:$0xf]
      %v1005 = vld [vmem:[%s5 + $0x18] sm:$0xf]
      %v1006 = vld [vmem:[%s5 + $0x1c] sm:$0xf]
      %v1007 = vld [vmem:[%s5 + $0x20] sm:$0xf]
      %v1008 = vld [vmem:[%s5 + $0x24] sm:$0xf]
      %v1009 = vld [vmem:[%s5 + $0x28] sm:$0xf]
      %v1010 = vld [vmem:[%s5 + $0x2c] sm:$0xf]
      %v1011 = vld [vmem:[%s5 + $0x30] sm:$0xf]
      %v1012 = vld [vmem:[%s5 + $0x34] sm:$0xf]
      %v1013 = vld [vmem:[%s5 + $0x38] sm:$0xf]
      %v1014 = vld [vmem:[%s5 + $0x3c] sm:$0xf]
      %v1015 = vld [vmem:[%s6] sm:$0x1]
      %v1017 = vlaneseq
      %v1018 = vshrl.u32 %v1017, 7
      %v1019 = vsub.s32 0, %v1018
      %v1020 = vrot.slane %v1015, %v1019
      %v1038 = vunpack.c.l.b16 %v999
      %v1039 = vunpack.c.l.b16 %v1000
      %v1040 = vunpack.c.l.b16 %v1001
      %v1041 = vunpack.c.l.b16 %v1002
      %v1042 = vunpack.c.l.b16 %v1003
      %v1043 = vunpack.c.l.b16 %v1004
      %v1044 = vunpack.c.l.b16 %v1005
      %v1045 = vunpack.c.l.b16 %v1006
      %v1046 = vunpack.c.l.b16 %v1007
      %v1047 = vunpack.c.l.b16 %v1008
      %v1048 = vunpack.c.l.b16 %v1009
      %v1049 = vunpack.c.l.b16 %v1010
      %v1050 = vunpack.c.l.b16 %v1011
      %v1051 = vunpack.c.l.b16 %v1012
      %v1052 = vunpack.c.l.b16 %v1013
      %v1053 = vunpack.c.l.b16 %v1014
      %v1054 = vpack.c.b16 %v1039, %v1038
      %v1055 = vpack.c.b16 %v1041, %v1040
      %v1056 = vpack.c.b16 %v1043, %v1042
      %v1057 = vpack.c.b16 %v1045, %v1044
      %v1058 = vpack.c.b16 %v1047, %v1046
      %v1059 = vpack.c.b16 %v1049, %v1048
      %v1060 = vpack.c.b16 %v1051, %v1050
      %v1061 = vpack.c.b16 %v1053, %v1052
      %1070 = vmatprep.subr.bf16.mxu0 0
      %1071 = vmatpush1.bf16.msra.mxu0 %v1061
      %1072 = vmatprep.subr.bf16.mxu0 0
      %1073 = vmatpush1.bf16.msra.mxu0 %v1060
      %1074 = vmatprep.subr.bf16.mxu0 0
      %1075 = vmatpush1.bf16.msra.mxu0 %v1059
      %1076 = vmatprep.subr.bf16.mxu0 0
      %1077 = vmatpush1.bf16.msra.mxu0 %v1058
      %1078 = vmatprep.subr.bf16.mxu0 0
      %1079 = vmatpush1.bf16.msra.mxu0 %v1057
      %1080 = vmatprep.subr.bf16.mxu0 0
      %1081 = vmatpush1.bf16.msra.mxu0 %v1056
      %1082 = vmatprep.subr.bf16.mxu0 0
      %1083 = vmatpush1.bf16.msra.mxu0 %v1055
      %1084 = vmatprep.subr.bf16.mxu0 0
      %1085 = vmatpush1.bf16.msra.mxu0 %v1054
      %1086 = vmatprep.subr.bf16.mxu0 0
      %1087 = vmatpush2.bf16.msra.mxu0 0
      %1088 = vmatprep.subr.bf16.mxu0 0
      %1089 = vmatpush2.bf16.msra.mxu0 0
      %1090 = vmatprep.subr.bf16.mxu0 0
      %1091 = vmatpush2.bf16.msra.mxu0 0
      %1092 = vmatprep.subr.bf16.mxu0 0
      %1093 = vmatpush2.bf16.msra.mxu0 0
      %1094 = vmatprep.subr.bf16.mxu0 0
      %1095 = vmatpush2.bf16.msra.mxu0 0
      %1096 = vmatprep.subr.bf16.mxu0 0
      %1097 = vmatpush2.bf16.msra.mxu0 0
      %1098 = vmatprep.subr.bf16.mxu0 0
      %1099 = vmatpush2.bf16.msra.mxu0 0
      %1100 = vmatprep.subr.bf16.mxu0 0
      %1101 = vmatpush2.bf16.msra.mxu0 0
      %1102 = vmatprep.mubr.bf16.mxu0 0
      %1103 = vmatmul.mubr.bf16.gmra.mxu0 %v983
      %v1104 = vpop.f32.mrf.mxu0
      %v1105 = vadd.f32 %v1020, %v1104
      %v1106 = vpop.f32.mrf.mxu0
      %v1107 = vpop.f32.mrf.mxu0
      %v1108 = vadd.f32 %v1020, %v1107
      %v1109 = vpop.f32.mrf.mxu0
      %1110 = vmatprep.mubr.bf16.mxu0 0
      %1111 = vmatmul.mubr.bf16.gmra.mxu0 %v984
      %v1112 = vpop.f32.mrf.mxu0
      %v1113 = vadd.f32 %v1020, %v1112
      %v1114 = vpop.f32.mrf.mxu0
      %v1115 = vpop.f32.mrf.mxu0
      %v1116 = vadd.f32 %v1020, %v1115
      %v1117 = vpop.f32.mrf.mxu0
      %1118 = vmatprep.mubr.bf16.mxu0 0
      %1119 = vmatmul.mubr.bf16.gmra.mxu0 %v985
      %v1120 = vpop.f32.mrf.mxu0
      %v1121 = vadd.f32 %v1020, %v1120
      %v1122 = vpop.f32.mrf.mxu0
      %v1123 = vpop.f32.mrf.mxu0
      %v1124 = vadd.f32 %v1020, %v1123
      %v1125 = vpop.f32.mrf.mxu0
      %1126 = vmatprep.mubr.bf16.mxu0 0
      %1127 = vmatmul.mubr.bf16.gmra.mxu0 %v986
      %v1128 = vpop.f32.mrf.mxu0
      %v1129 = vadd.f32 %v1020, %v1128
      %v1130 = vpop.f32.mrf.mxu0
      %v1131 = vpop.f32.mrf.mxu0
      %v1132 = vadd.f32 %v1020, %v1131
      %v1133 = vpop.f32.mrf.mxu0
      %1134 = vmatprep.mubr.bf16.mxu0 0
      %1135 = vmatmul.mubr.bf16.gmra.mxu0 %v987
      %v1136 = vpop.f32.mrf.mxu0
      %v1137 = vadd.f32 %v1020, %v1136
      %v1138 = vpop.f32.mrf.mxu0
      %v1139 = vpop.f32.mrf.mxu0
      %v1140 = vadd.f32 %v1020, %v1139
      %v1141 = vpop.f32.mrf.mxu0
      %1142 = vmatprep.mubr.bf16.mxu0 0
      %1143 = vmatmul.mubr.bf16.gmra.mxu0 %v988
      %v1144 = vpop.f32.mrf.mxu0
      %v1145 = vadd.f32 %v1020, %v1144
      %v1146 = vpop.f32.mrf.mxu0
      %v1147 = vpop.f32.mrf.mxu0
      %v1148 = vadd.f32 %v1020, %v1147
      %v1149 = vpop.f32.mrf.mxu0
      %1150 = vmatprep.mubr.bf16.mxu0 0
      %1151 = vmatmul.mubr.bf16.gmra.mxu0 %v989
      %v1152 = vpop.f32.mrf.mxu0
      %v1153 = vadd.f32 %v1020, %v1152
      %v1154 = vpop.f32.mrf.mxu0
      %v1155 = vpop.f32.mrf.mxu0
      %v1156 = vadd.f32 %v1020, %v1155
      %v1157 = vpop.f32.mrf.mxu0
      %1158 = vmatprep.mubr.bf16.mxu0 0
      %1159 = vmatmul.mubr.bf16.gmra.mxu0 %v990
      %v1160 = vpop.f32.mrf.mxu0
      %v1161 = vadd.f32 %v1020, %v1160
      %v1162 = vpop.f32.mrf.mxu0
      %v1163 = vpop.f32.mrf.mxu0
      %v1164 = vadd.f32 %v1020, %v1163
      %v1165 = vpop.f32.mrf.mxu0
      %1166 = vmatprep.mubr.bf16.mxu0 0
      %1167 = vmatmul.mubr.bf16.gmra.mxu0 %v991
      %v1168 = vpop.f32.mrf.mxu0
      %v1169 = vadd.f32 %v1020, %v1168
      %v1170 = vpop.f32.mrf.mxu0
      %v1171 = vpop.f32.mrf.mxu0
      %v1172 = vadd.f32 %v1020, %v1171
      %v1173 = vpop.f32.mrf.mxu0
      %1174 = vmatprep.mubr.bf16.mxu0 0
      %1175 = vmatmul.mubr.bf16.gmra.mxu0 %v992
      %v1176 = vpop.f32.mrf.mxu0
      %v1177 = vadd.f32 %v1020, %v1176
      %v1178 = vpop.f32.mrf.mxu0
      %v1179 = vpop.f32.mrf.mxu0
      %v1180 = vadd.f32 %v1020, %v1179
      %v1181 = vpop.f32.mrf.mxu0
      %1182 = vmatprep.mubr.bf16.mxu0 0
      %1183 = vmatmul.mubr.bf16.gmra.mxu0 %v993
      %v1184 = vpop.f32.mrf.mxu0
      %v1185 = vadd.f32 %v1020, %v1184
      %v1186 = vpop.f32.mrf.mxu0
      %v1187 = vpop.f32.mrf.mxu0
      %v1188 = vadd.f32 %v1020, %v1187
      %v1189 = vpop.f32.mrf.mxu0
      %1190 = vmatprep.mubr.bf16.mxu0 0
      %1191 = vmatmul.mubr.bf16.gmra.mxu0 %v994
      %v1192 = vpop.f32.mrf.mxu0
      %v1193 = vadd.f32 %v1020, %v1192
      %v1194 = vpop.f32.mrf.mxu0
      %v1195 = vpop.f32.mrf.mxu0
      %v1196 = vadd.f32 %v1020, %v1195
      %v1197 = vpop.f32.mrf.mxu0
      %1198 = vmatprep.mubr.bf16.mxu0 0
      %1199 = vmatmul.mubr.bf16.gmra.mxu0 %v995
      %v1200 = vpop.f32.mrf.mxu0
      %v1201 = vadd.f32 %v1020, %v1200
      %v1202 = vpop.f32.mrf.mxu0
      %v1203 = vpop.f32.mrf.mxu0
      %v1204 = vadd.f32 %v1020, %v1203
      %v1205 = vpop.f32.mrf.mxu0
      %1206 = vmatprep.mubr.bf16.mxu0 0
      %1207 = vmatmul.mubr.bf16.gmra.mxu0 %v996
      %v1208 = vpop.f32.mrf.mxu0
      %v1209 = vadd.f32 %v1020, %v1208
      %v1210 = vpop.f32.mrf.mxu0
      %v1211 = vpop.f32.mrf.mxu0
      %v1212 = vadd.f32 %v1020, %v1211
      %v1213 = vpop.f32.mrf.mxu0
      %1214 = vmatprep.mubr.bf16.mxu0 0
      %1215 = vmatmul.mubr.bf16.gmra.mxu0 %v997
      %v1216 = vpop.f32.mrf.mxu0
      %v1217 = vadd.f32 %v1020, %v1216
      %v1218 = vpop.f32.mrf.mxu0
      %v1219 = vpop.f32.mrf.mxu0
      %v1220 = vadd.f32 %v1020, %v1219
      %v1221 = vpop.f32.mrf.mxu0
      %1222 = vmatprep.mubr.bf16.mxu0 0
      %1223 = vmatmul.mubr.bf16.gmra.mxu0 %v998
      %v1224 = vpop.f32.mrf.mxu0
      %v1225 = vadd.f32 %v1020, %v1224
      %v1226 = vpop.f32.mrf.mxu0
      %v1227 = vpop.f32.mrf.mxu0
      %v1228 = vadd.f32 %v1020, %v1227
      %v1229 = vpop.f32.mrf.mxu0
      %1230 = vdwg.mxu0
      %v1231 = vmax.f32 %v1105, 0.0
      %v1232 = vmax.f32 %v1108, 0.0
      %v1233 = vmax.f32 %v1113, 0.0
      %v1234 = vmax.f32 %v1116, 0.0
      %v1235 = vmax.f32 %v1121, 0.0
      %v1236 = vmax.f32 %v1124, 0.0
      %v1237 = vmax.f32 %v1129, 0.0
      %v1238 = vmax.f32 %v1132, 0.0
      %v1239 = vmax.f32 %v1137, 0.0
      %v1240 = vmax.f32 %v1140, 0.0
      %v1241 = vmax.f32 %v1145, 0.0
      %v1242 = vmax.f32 %v1148, 0.0
      %v1243 = vmax.f32 %v1153, 0.0
      %v1244 = vmax.f32 %v1156, 0.0
      %v1245 = vmax.f32 %v1161, 0.0
      %v1246 = vmax.f32 %v1164, 0.0
      %v1247 = vmax.f32 %v1169, 0.0
      %v1248 = vmax.f32 %v1172, 0.0
      %v1249 = vmax.f32 %v1177, 0.0
      %v1250 = vmax.f32 %v1180, 0.0
      %v1251 = vmax.f32 %v1185, 0.0
      %v1252 = vmax.f32 %v1188, 0.0
      %v1253 = vmax.f32 %v1193, 0.0
      %v1254 = vmax.f32 %v1196, 0.0
      %v1255 = vmax.f32 %v1201, 0.0
      %v1256 = vmax.f32 %v1204, 0.0
      %v1257 = vmax.f32 %v1209, 0.0
      %v1258 = vmax.f32 %v1212, 0.0
      %v1259 = vmax.f32 %v1217, 0.0
      %v1260 = vmax.f32 %v1220, 0.0
      %v1261 = vmax.f32 %v1225, 0.0
      %v1262 = vmax.f32 %v1228, 0.0
      %v1263 = vpack.c.bf16 %v1232, %v1231
      %v1264 = vpack.c.bf16 %v1234, %v1233
      %v1265 = vpack.c.bf16 %v1236, %v1235
      %v1266 = vpack.c.bf16 %v1238, %v1237
      %v1267 = vpack.c.bf16 %v1240, %v1239
      %v1268 = vpack.c.bf16 %v1242, %v1241
      %v1269 = vpack.c.bf16 %v1244, %v1243
      %v1270 = vpack.c.bf16 %v1246, %v1245
      %v1271 = vpack.c.bf16 %v1248, %v1247
      %v1272 = vpack.c.bf16 %v1250, %v1249
      %v1273 = vpack.c.bf16 %v1252, %v1251
      %v1274 = vpack.c.bf16 %v1254, %v1253
      %v1275 = vpack.c.bf16 %v1256, %v1255
      %v1276 = vpack.c.bf16 %v1258, %v1257
      %v1277 = vpack.c.bf16 %v1260, %v1259
      %v1278 = vpack.c.bf16 %v1262, %v1261
      %v1279 = vld [vmem:[%s7] sm:$0xf]
      %v1280 = vld [vmem:[%s7 + $0x4] sm:$0xf]
      %v1281 = vld [vmem:[%s7 + $0x8] sm:$0xf]
      %v1282 = vld [vmem:[%s7 + $0xc] sm:$0xf]
      %v1283 = vld [vmem:[%s7 + $0x10] sm:$0xf]
      %v1284 = vld [vmem:[%s7 + $0x14] sm:$0xf]
      %v1285 = vld [vmem:[%s7 + $0x18] sm:$0xf]
      %v1286 = vld [vmem:[%s7 + $0x1c] sm:$0xf]
      %v1287 = vld [vmem:[%s7 + $0x20] sm:$0xf]
      %v1288 = vld [vmem:[%s7 + $0x24] sm:$0xf]
      %v1289 = vld [vmem:[%s7 + $0x28] sm:$0xf]
      %v1290 = vld [vmem:[%s7 + $0x2c] sm:$0xf]
      %v1291 = vld [vmem:[%s7 + $0x30] sm:$0xf]
      %v1292 = vld [vmem:[%s7 + $0x34] sm:$0xf]
      %v1293 = vld [vmem:[%s7 + $0x38] sm:$0xf]
      %v1294 = vld [vmem:[%s7 + $0x3c] sm:$0xf]
      %v1295 = vld [vmem:[%s8] sm:$0x1]
      %v1297 = vlaneseq
      %v1298 = vshrl.u32 %v1297, 7
      %v1299 = vsub.s32 0, %v1298
      %v1300 = vrot.slane %v1295, %v1299
      %v1318 = vunpack.c.l.b16 %v1279
      %v1319 = vunpack.c.l.b16 %v1280
      %v1320 = vunpack.c.l.b16 %v1281
      %v1321 = vunpack.c.l.b16 %v1282
      %v1322 = vunpack.c.l.b16 %v1283
      %v1323 = vunpack.c.l.b16 %v1284
      %v1324 = vunpack.c.l.b16 %v1285
      %v1325 = vunpack.c.l.b16 %v1286
      %v1326 = vunpack.c.l.b16 %v1287
      %v1327 = vunpack.c.l.b16 %v1288
      %v1328 = vunpack.c.l.b16 %v1289
      %v1329 = vunpack.c.l.b16 %v1290
      %v1330 = vunpack.c.l.b16 %v1291
      %v1331 = vunpack.c.l.b16 %v1292
      %v1332 = vunpack.c.l.b16 %v1293
      %v1333 = vunpack.c.l.b16 %v1294
      %v1334 = vpack.c.b16 %v1319, %v1318
      %v1335 = vpack.c.b16 %v1321, %v1320
      %v1336 = vpack.c.b16 %v1323, %v1322
      %v1337 = vpack.c.b16 %v1325, %v1324
      %v1338 = vpack.c.b16 %v1327, %v1326
      %v1339 = vpack.c.b16 %v1329, %v1328
      %v1340 = vpack.c.b16 %v1331, %v1330
      %v1341 = vpack.c.b16 %v1333, %v1332
      %1350 = vmatprep.subr.bf16.mxu0 0
      %1351 = vmatpush1.bf16.msra.mxu0 %v1341
      %1352 = vmatprep.subr.bf16.mxu0 0
      %1353 = vmatpush1.bf16.msra.mxu0 %v1340
      %1354 = vmatprep.subr.bf16.mxu0 0
      %1355 = vmatpush1.bf16.msra.mxu0 %v1339
      %1356 = vmatprep.subr.bf16.mxu0 0
      %1357 = vmatpush1.bf16.msra.mxu0 %v1338
      %1358 = vmatprep.subr.bf16.mxu0 0
      %1359 = vmatpush1.bf16.msra.mxu0 %v1337
      %1360 = vmatprep.subr.bf16.mxu0 0
      %1361 = vmatpush1.bf16.msra.mxu0 %v1336
      %1362 = vmatprep.subr.bf16.mxu0 0
      %1363 = vmatpush1.bf16.msra.mxu0 %v1335
      %1364 = vmatprep.subr.bf16.mxu0 0
      %1365 = vmatpush1.bf16.msra.mxu0 %v1334
      %1366 = vmatprep.subr.bf16.mxu0 0
      %1367 = vmatpush2.bf16.msra.mxu0 0
      %1368 = vmatprep.subr.bf16.mxu0 0
      %1369 = vmatpush2.bf16.msra.mxu0 0
      %1370 = vmatprep.subr.bf16.mxu0 0
      %1371 = vmatpush2.bf16.msra.mxu0 0
      %1372 = vmatprep.subr.bf16.mxu0 0
      %1373 = vmatpush2.bf16.msra.mxu0 0
      %1374 = vmatprep.subr.bf16.mxu0 0
      %1375 = vmatpush2.bf16.msra.mxu0 0
      %1376 = vmatprep.subr.bf16.mxu0 0
      %1377 = vmatpush2.bf16.msra.mxu0 0
      %1378 = vmatprep.subr.bf16.mxu0 0
      %1379 = vmatpush2.bf16.msra.mxu0 0
      %1380 = vmatprep.subr.bf16.mxu0 0
      %1381 = vmatpush2.bf16.msra.mxu0 0
      %1382 = vmatprep.mubr.bf16.mxu0 0
      %1383 = vmatmul.mubr.bf16.gmra.mxu0 %v1263
      %v1384 = vpop.f32.mrf.mxu0
      %v1385 = vadd.f32 %v1300, %v1384
      %v1386 = vpop.f32.mrf.mxu0
      %v1387 = vpop.f32.mrf.mxu0
      %v1388 = vadd.f32 %v1300, %v1387
      %v1389 = vpop.f32.mrf.mxu0
      %1390 = vmatprep.mubr.bf16.mxu0 0
      %1391 = vmatmul.mubr.bf16.gmra.mxu0 %v1264
      %v1392 = vpop.f32.mrf.mxu0
      %v1393 = vadd.f32 %v1300, %v1392
      %v1394 = vpop.f32.mrf.mxu0
      %v1395 = vpop.f32.mrf.mxu0
      %v1396 = vadd.f32 %v1300, %v1395
      %v1397 = vpop.f32.mrf.mxu0
      %1398 = vmatprep.mubr.bf16.mxu0 0
      %1399 = vmatmul.mubr.bf16.gmra.mxu0 %v1265
      %v1400 = vpop.f32.mrf.mxu0
      %v1401 = vadd.f32 %v1300, %v1400
      %v1402 = vpop.f32.mrf.mxu0
      %v1403 = vpop.f32.mrf.mxu0
      %v1404 = vadd.f32 %v1300, %v1403
      %v1405 = vpop.f32.mrf.mxu0
      %1406 = vmatprep.mubr.bf16.mxu0 0
      %1407 = vmatmul.mubr.bf16.gmra.mxu0 %v1266
      %v1408 = vpop.f32.mrf.mxu0
      %v1409 = vadd.f32 %v1300, %v1408
      %v1410 = vpop.f32.mrf.mxu0
      %v1411 = vpop.f32.mrf.mxu0
      %v1412 = vadd.f32 %v1300, %v1411
      %v1413 = vpop.f32.mrf.mxu0
      %1414 = vmatprep.mubr.bf16.mxu0 0
      %1415 = vmatmul.mubr.bf16.gmra.mxu0 %v1267
      %v1416 = vpop.f32.mrf.mxu0
      %v1417 = vadd.f32 %v1300, %v1416
      %v1418 = vpop.f32.mrf.mxu0
      %v1419 = vpop.f32.mrf.mxu0
      %v1420 = vadd.f32 %v1300, %v1419
      %v1421 = vpop.f32.mrf.mxu0
      %1422 = vmatprep.mubr.bf16.mxu0 0
      %1423 = vmatmul.mubr.bf16.gmra.mxu0 %v1268
      %v1424 = vpop.f32.mrf.mxu0
      %v1425 = vadd.f32 %v1300, %v1424
      %v1426 = vpop.f32.mrf.mxu0
      %v1427 = vpop.f32.mrf.mxu0
      %v1428 = vadd.f32 %v1300, %v1427
      %v1429 = vpop.f32.mrf.mxu0
      %1430 = vmatprep.mubr.bf16.mxu0 0
      %1431 = vmatmul.mubr.bf16.gmra.mxu0 %v1269
      %v1432 = vpop.f32.mrf.mxu0
      %v1433 = vadd.f32 %v1300, %v1432
      %v1434 = vpop.f32.mrf.mxu0
      %v1435 = vpop.f32.mrf.mxu0
      %v1436 = vadd.f32 %v1300, %v1435
      %v1437 = vpop.f32.mrf.mxu0
      %1438 = vmatprep.mubr.bf16.mxu0 0
      %1439 = vmatmul.mubr.bf16.gmra.mxu0 %v1270
      %v1440 = vpop.f32.mrf.mxu0
      %v1441 = vadd.f32 %v1300, %v1440
      %v1442 = vpop.f32.mrf.mxu0
      %v1443 = vpop.f32.mrf.mxu0
      %v1444 = vadd.f32 %v1300, %v1443
      %v1445 = vpop.f32.mrf.mxu0
      %1446 = vmatprep.mubr.bf16.mxu0 0
      %1447 = vmatmul.mubr.bf16.gmra.mxu0 %v1271
      %v1448 = vpop.f32.mrf.mxu0
      %v1449 = vadd.f32 %v1300, %v1448
      %v1450 = vpop.f32.mrf.mxu0
      %v1451 = vpop.f32.mrf.mxu0
      %v1452 = vadd.f32 %v1300, %v1451
      %v1453 = vpop.f32.mrf.mxu0
      %1454 = vmatprep.mubr.bf16.mxu0 0
      %1455 = vmatmul.mubr.bf16.gmra.mxu0 %v1272
      %v1456 = vpop.f32.mrf.mxu0
      %v1457 = vadd.f32 %v1300, %v1456
      %v1458 = vpop.f32.mrf.mxu0
      %v1459 = vpop.f32.mrf.mxu0
      %v1460 = vadd.f32 %v1300, %v1459
      %v1461 = vpop.f32.mrf.mxu0
      %1462 = vmatprep.mubr.bf16.mxu0 0
      %1463 = vmatmul.mubr.bf16.gmra.mxu0 %v1273
      %v1464 = vpop.f32.mrf.mxu0
      %v1465 = vadd.f32 %v1300, %v1464
      %v1466 = vpop.f32.mrf.mxu0
      %v1467 = vpop.f32.mrf.mxu0
      %v1468 = vadd.f32 %v1300, %v1467
      %v1469 = vpop.f32.mrf.mxu0
      %1470 = vmatprep.mubr.bf16.mxu0 0
      %1471 = vmatmul.mubr.bf16.gmra.mxu0 %v1274
      %v1472 = vpop.f32.mrf.mxu0
      %v1473 = vadd.f32 %v1300, %v1472
      %v1474 = vpop.f32.mrf.mxu0
      %v1475 = vpop.f32.mrf.mxu0
      %v1476 = vadd.f32 %v1300, %v1475
      %v1477 = vpop.f32.mrf.mxu0
      %1478 = vmatprep.mubr.bf16.mxu0 0
      %1479 = vmatmul.mubr.bf16.gmra.mxu0 %v1275
      %v1480 = vpop.f32.mrf.mxu0
      %v1481 = vadd.f32 %v1300, %v1480
      %v1482 = vpop.f32.mrf.mxu0
      %v1483 = vpop.f32.mrf.mxu0
      %v1484 = vadd.f32 %v1300, %v1483
      %v1485 = vpop.f32.mrf.mxu0
      %1486 = vmatprep.mubr.bf16.mxu0 0
      %1487 = vmatmul.mubr.bf16.gmra.mxu0 %v1276
      %v1488 = vpop.f32.mrf.mxu0
      %v1489 = vadd.f32 %v1300, %v1488
      %v1490 = vpop.f32.mrf.mxu0
      %v1491 = vpop.f32.mrf.mxu0
      %v1492 = vadd.f32 %v1300, %v1491
      %v1493 = vpop.f32.mrf.mxu0
      %1494 = vmatprep.mubr.bf16.mxu0 0
      %1495 = vmatmul.mubr.bf16.gmra.mxu0 %v1277
      %v1496 = vpop.f32.mrf.mxu0
      %v1497 = vadd.f32 %v1300, %v1496
      %v1498 = vpop.f32.mrf.mxu0
      %v1499 = vpop.f32.mrf.mxu0
      %v1500 = vadd.f32 %v1300, %v1499
      %v1501 = vpop.f32.mrf.mxu0
      %1502 = vmatprep.mubr.bf16.mxu0 0
      %1503 = vmatmul.mubr.bf16.gmra.mxu0 %v1278
      %v1504 = vpop.f32.mrf.mxu0
      %v1505 = vadd.f32 %v1300, %v1504
      %v1506 = vpop.f32.mrf.mxu0
      %v1507 = vpop.f32.mrf.mxu0
      %v1508 = vadd.f32 %v1300, %v1507
      %v1509 = vpop.f32.mrf.mxu0
      %1510 = vdwg.mxu0
      %vm1511 = vcmask 261120
      %1512 = vst.msk [vmem:[%s334] sm:$0xff] %vm1511, %v1385
      %1513 = vst.msk [vmem:[%s334 + $0x8] sm:$0xff] %vm1511, %v1388
      %1514 = vst.msk [vmem:[%s334 + $0x10] sm:$0xff] %vm1511, %v1393
      %1515 = vst.msk [vmem:[%s334 + $0x18] sm:$0xff] %vm1511, %v1396
      %1516 = vst.msk [vmem:[%s334 + $0x20] sm:$0xff] %vm1511, %v1401
      %1517 = vst.msk [vmem:[%s334 + $0x28] sm:$0xff] %vm1511, %v1404
      %1518 = vst.msk [vmem:[%s334 + $0x30] sm:$0xff] %vm1511, %v1409
      %1519 = vst.msk [vmem:[%s334 + $0x38] sm:$0xff] %vm1511, %v1412
      %1520 = vst.msk [vmem:[%s334 + $0x40] sm:$0xff] %vm1511, %v1417
      %1521 = vst.msk [vmem:[%s334 + $0x48] sm:$0xff] %vm1511, %v1420
      %1522 = vst.msk [vmem:[%s334 + $0x50] sm:$0xff] %vm1511, %v1425
      %1523 = vst.msk [vmem:[%s334 + $0x58] sm:$0xff] %vm1511, %v1428
      %1524 = vst.msk [vmem:[%s334 + $0x60] sm:$0xff] %vm1511, %v1433
      %1525 = vst.msk [vmem:[%s334 + $0x68] sm:$0xff] %vm1511, %v1436
      %1526 = vst.msk [vmem:[%s334 + $0x70] sm:$0xff] %vm1511, %v1441
      %1527 = vst.msk [vmem:[%s334 + $0x78] sm:$0xff] %vm1511, %v1444
      %1528 = vst.msk [vmem:[%s334 + $0x80] sm:$0xff] %vm1511, %v1449
      %1529 = vst.msk [vmem:[%s334 + $0x88] sm:$0xff] %vm1511, %v1452
      %1530 = vst.msk [vmem:[%s334 + $0x90] sm:$0xff] %vm1511, %v1457
      %1531 = vst.msk [vmem:[%s334 + $0x98] sm:$0xff] %vm1511, %v1460
      %1532 = vst.msk [vmem:[%s334 + $0xa0] sm:$0xff] %vm1511, %v1465
      %1533 = vst.msk [vmem:[%s334 + $0xa8] sm:$0xff] %vm1511, %v1468
      %1534 = vst.msk [vmem:[%s334 + $0xb0] sm:$0xff] %vm1511, %v1473
      %1535 = vst.msk [vmem:[%s334 + $0xb8] sm:$0xff] %vm1511, %v1476
      %1536 = vst.msk [vmem:[%s334 + $0xc0] sm:$0xff] %vm1511, %v1481
      %1537 = vst.msk [vmem:[%s334 + $0xc8] sm:$0xff] %vm1511, %v1484
      %1538 = vst.msk [vmem:[%s334 + $0xd0] sm:$0xff] %vm1511, %v1489
      %1539 = vst.msk [vmem:[%s334 + $0xd8] sm:$0xff] %vm1511, %v1492
      %1540 = vst.msk [vmem:[%s334 + $0xe0] sm:$0xff] %vm1511, %v1497
      %1541 = vst.msk [vmem:[%s334 + $0xe8] sm:$0xff] %vm1511, %v1500
      %1542 = vst.msk [vmem:[%s334 + $0xf0] sm:$0xff] %vm1511, %v1505
      %1543 = vst.msk [vmem:[%s334 + $0xf8] sm:$0xff] %vm1511, %v1508
      %s1544 = smul.u32 32, %s20
      %p1545 = scmp.lt.s32.totalorder %s1544, 63
      %s1546 = scalar_select %p1545, %s1544, 63
      %s1547 = smul.addr %s1546, 8
      %s1548 = scalar_lea.vmem %s9, %s1547
      // Predicated region
      $region57: #{dqn_forward_pallas.1} parent=55 // pred_check
        %p1549 = pneg %p232
      $region58: #{dqn_forward_pallas.1} parent=55 // pred_check_branch
        %1551 = sbr.rel (%p1549) target = $region60
      $region59: #{dqn_forward_pallas.1} parent=55 // pred_region
        %s1552 = smul.u32 32, %s20
      $region60: #{dqn_forward_pallas.1} parent=55 // pred_fallthru
        _
    $region56: #{dqn_forward_pallas.1} parent=5 // pred_fallthru
      _
    %p1553 = scmp.le.s32.totalorder 2, %s15
    // Predicated region
    $region61: #{dqn_forward_pallas.1} parent=5 // pred_check
      %p1554 = pneg %p1553
    $region62: #{dqn_forward_pallas.1} parent=5 // pred_check_branch
      %1556 = sbr.rel (%p1554) target = $region64
    $region63: #{dqn_forward_pallas.1} parent=5 // pred_region
      %s1557 = ssub.s32 %s15, 2
      // Predicated region
      $region65: #{dqn_forward_pallas.1} parent=63 // pred_check
        %p1558 = pneg %p238
      $region66: #{dqn_forward_pallas.1} parent=63 // pred_check_branch
        %1560 = sbr.rel (%p1558) target = $region68
      $region67: #{dqn_forward_pallas.1} parent=63 // pred_region
        %s1561 = smul.u32 32, %s21
        %p1562 = scmp.lt.s32.totalorder %s1561, 63
        %s1563 = scalar_select %p1562, %s1561, 63
        %s1564 = smul.addr %s1563, 8
        %s1565 = scalar_lea.vmem %s9, %s1564
      $region68: #{dqn_forward_pallas.1} parent=63 // pred_fallthru
        _
    $region64: #{dqn_forward_pallas.1} parent=5 // pred_fallthru
      _
  $region6: #{dqn_forward_pallas.1} parent=0 // loop_footer
    %s19 = sadd.s32 1, %s15
  $region7: #{dqn_forward_pallas.1} parent=0 // loop_footer_branch
    %14 = sbr.rel target = $region3
  $region8: #{dqn_forward_pallas.1} parent=0 // loop_exit
    _

</llo_original>
